<compile_context>
chip_gen: v7x
topology: tpu7x:2x2x1
jax: 0.10.0
libtpu: 0.0.40
codegen_flags: <defaults>
</compile_context>

<pallas_src>
import math

import jax
import jax.numpy as jnp
from jax import lax
from jax.experimental import pallas as pl
from jax.experimental.pallas import tpu as pltpu

N_HEADS = 4
D_MODEL = 32
D_FF = 64
D_HEAD = D_MODEL // N_HEADS
LN_EPS = 1e-5          # PyTorch nn.LayerNorm default eps
NEG_INF = -1e9


def _layer_norm(h, gamma, beta):
    mu = jnp.mean(h, axis=-1, keepdims=True)
    var = jnp.mean((h - mu) * (h - mu), axis=-1, keepdims=True)
    return (h - mu) * lax.rsqrt(var + LN_EPS) * gamma + beta


def encoder_layer_kernel(
    xq_ref, xkv_ref, mask_ref,
    wq_ref, bq_ref, wkv_ref, bkv_ref, wo_ref, bo_ref,
    g1_ref, be1_ref, w1_ref, b1_ref, w2_ref, b2_ref, g2_ref, be2_ref,
    out_ref, attn_ref,
):
    TQ, D = xq_ref.shape           # query-block rows, d_model
    S = xkv_ref.shape[0]           # full key/value sequence length
    H, DH = N_HEADS, D_HEAD

    x_q = xq_ref[...]                                 # (TQ, D) f32 residual stream
    xq_bf = x_q.astype(jnp.bfloat16)
    xkv_bf = xkv_ref[...].astype(jnp.bfloat16)

    # ---- Projections: bf16 operands, f32 accumulation.  Scale folded into Wq/bq. ----
    q = jnp.dot(xq_bf, wq_ref[...], preferred_element_type=jnp.float32) + bq_ref[...]      # (TQ, D)
    kv = jnp.dot(xkv_bf, wkv_ref[...], preferred_element_type=jnp.float32) + bkv_ref[...]  # (S, 2D)

    # ---- Head split: static lane slices + leading-axis stack -> head-major tensors. ----
    # TODO(synk): at realistic D_HEAD use pltpu.einshape("qhd->hqd", ...) (or a head grid
    # axis) instead of per-head lane slices; at DH=8 the slices are the known-good path.
    q_h = jnp.stack([q[:, h * DH:(h + 1) * DH] for h in range(H)], axis=0)            # (H, TQ, DH)
    k_h = jnp.stack([kv[:, h * DH:(h + 1) * DH] for h in range(H)], axis=0)           # (H, S, DH)
    v_h = jnp.stack([kv[:, D + h * DH:D + (h + 1) * DH] for h in range(H)], axis=0)   # (H, S, DH)
    q_h = q_h.astype(jnp.bfloat16)
    k_h = k_h.astype(jnp.bfloat16)
    v_h = v_h.astype(jnp.bfloat16)

    # ---- One batched attention over all heads. ----
    s = jnp.einsum("hqd,hkd->hqk", q_h, k_h, preferred_element_type=jnp.float32)      # (H, TQ, S)
    # additive key-padding bias: 0 where attend, -1e9 where masked (broadcast over H, TQ)
    s = s + (mask_ref[...] - 1.0) * jnp.float32(1e9)

    # numerically-stable softmax over keys, f32; EUP reciprocal instead of VPU divide
    m = jnp.max(s, axis=-1, keepdims=True)
    e = jnp.exp(s - m)
    denom = jnp.sum(e, axis=-1, keepdims=True)
    p = e * pl.reciprocal(denom, approx=True)                                          # (H, TQ, S)

    attn_ref[...] = p                               # single full-block store for all heads

    ctx = jnp.einsum("hqk,hkd->hqd", p.astype(jnp.bfloat16), v_h,
                     preferred_element_type=jnp.float32)                              # (H, TQ, DH)
    ctx = jnp.concatenate([ctx[h] for h in range(H)], axis=-1).astype(jnp.bfloat16)   # (TQ, D)

    mha = jnp.dot(ctx, wo_ref[...], preferred_element_type=jnp.float32) + bo_ref[...]

    # ---- Add & LayerNorm 1 (f32). ----
    h1 = _layer_norm(x_q + mha, g1_ref[...], be1_ref[...])

    # ---- Point-wise feed-forward: W2(relu(W1 h1 + b1)) + b2  (bf16 matmuls, f32 math). ----
    f = jnp.dot(h1.astype(jnp.bfloat16), w1_ref[...],
                preferred_element_type=jnp.float32) + b1_ref[...]
    f = jnp.maximum(f, 0.0)
    f = jnp.dot(f.astype(jnp.bfloat16), w2_ref[...],
                preferred_element_type=jnp.float32) + b2_ref[...]

    # ---- Add & LayerNorm 2 (f32). ----
    out = _layer_norm(h1 + f, g2_ref[...], be2_ref[...])
    out_ref[...] = out.astype(out_ref.dtype)


def encoder_layer(x, mask, params):
    """x: (B, S, D) f32, mask: (B, 1, S) f32. Returns (out (B,S,D), attn (B,H,S,S))."""
    B, S, D = x.shape
    assert D == D_MODEL
    (wq, bq, wk, bk, wv, bv, wo, bo, g1, be1, w1, b1, w2, b2, g2, be2) = params

    # Host-side prep: fold 1/sqrt(d_head) into the Q projection, fuse K|V, cast weights bf16.
    scale = 1.0 / math.sqrt(D_HEAD)
    wq_s = (wq * scale).astype(jnp.bfloat16)
    bq_s = bq * scale                                               # stays f32
    wkv = jnp.concatenate([wk, wv], axis=1).astype(jnp.bfloat16)    # (D, 2D)
    bkv = jnp.concatenate([bk, bv], axis=1)                         # (1, 2D) f32
    wo_b = wo.astype(jnp.bfloat16)
    w1_b = w1.astype(jnp.bfloat16)
    w2_b = w2.astype(jnp.bfloat16)

    TQ = S if S <= 128 else 128
    assert S % TQ == 0, "sequence length must be a multiple of the query tile"
    grid = (B, S // TQ)

    const = lambda shape: pl.BlockSpec(shape, lambda b, qi: tuple(0 for _ in shape))

    in_specs = [
        pl.BlockSpec((None, TQ, D), lambda b, qi: (b, qi, 0)),   # x: query rows / residual
        pl.BlockSpec((None, S, D), lambda b, qi: (b, 0, 0)),     # x: full sequence for K/V
        pl.BlockSpec((None, 1, S), lambda b, qi: (b, 0, 0)),     # key-padding mask
        const((D, D)), const((1, D)),            # Wq (pre-scaled), bq (pre-scaled)
        const((D, 2 * D)), const((1, 2 * D)),    # W_kv, b_kv
        const((D, D)), const((1, D)),            # Wo, bo
        const((1, D)), const((1, D)),            # gamma1, beta1
        const((D, D_FF)), const((1, D_FF)),      # W1, b1
        const((D_FF, D)), const((1, D)),         # W2, b2
        const((1, D)), const((1, D)),            # gamma2, beta2
    ]
    out_specs = [
        pl.BlockSpec((None, TQ, D), lambda b, qi: (b, qi, 0)),
        pl.BlockSpec((None, N_HEADS, TQ, S), lambda b, qi: (b, 0, qi, 0)),
    ]
    out_shapes = (
        jax.ShapeDtypeStruct((B, S, D), jnp.float32),
        jax.ShapeDtypeStruct((B, N_HEADS, S, S), jnp.float32),
    )

    # Advisory cost estimate for XLA's scheduler.
    flops = 2 * B * S * (D * D + D * 2 * D + 2 * S * D + D * D + 2 * D * D_FF)
    bytes_accessed = (
        2 * B * S * D * 4 + B * S * 4                     # x (read twice) + mask
        + (4 * D * D + 2 * D * D_FF) * 2                  # bf16 weights
        + B * S * D * 4 + B * N_HEADS * S * S * 4         # out + attn
    )
    cost = pl.CostEstimate(flops=flops, transcendentals=B * N_HEADS * S * S,
                           bytes_accessed=bytes_accessed)

    grid_spec = pltpu.PrefetchScalarGridSpec(
        num_scalar_prefetch=0, grid=grid, in_specs=in_specs, out_specs=out_specs)

    return pl.pallas_call(
        encoder_layer_kernel,
        out_shape=out_shapes,
        grid_spec=grid_spec,
        compiler_params=pltpu.CompilerParams(
            dimension_semantics=("parallel", "parallel")),
        cost_estimate=cost,
    )(x, x, mask, wq_s, bq_s, wkv, bkv, wo_b, bo, g1, be1, w1_b, b1, w2_b, b2, g2, be2)


def make_params(key):
    """Deterministic synthetic parameters (weights stored as (in, out)), all f32."""
    ks = jax.random.split(key, 8)
    scl = 0.05
    p = []
    # Wq, bq, Wk, bk, Wv, bv, Wo, bo
    for i in range(4):
        p.append(scl * jax.random.normal(ks[i], (D_MODEL, D_MODEL), jnp.float32))
        p.append(0.01 * jnp.ones((1, D_MODEL), jnp.float32))
    # LayerNorm 1
    p.append(jnp.ones((1, D_MODEL), jnp.float32))
    p.append(jnp.zeros((1, D_MODEL), jnp.float32))
    # FFN
    p.append(scl * jax.random.normal(ks[4], (D_MODEL, D_FF), jnp.float32))
    p.append(0.01 * jnp.ones((1, D_FF), jnp.float32))
    p.append(scl * jax.random.normal(ks[5], (D_FF, D_MODEL), jnp.float32))
    p.append(0.01 * jnp.ones((1, D_MODEL), jnp.float32))
    # LayerNorm 2
    p.append(jnp.ones((1, D_MODEL), jnp.float32))
    p.append(jnp.zeros((1, D_MODEL), jnp.float32))
    return p


def reference(x, mask, params):
    """Pure-JAX f32 reference of the same forward pass (sanity check)."""
    (wq, bq, wk, bk, wv, bv, wo, bo, g1, be1, w1, b1, w2, b2, g2, be2) = params
    B, S, D = x.shape

    def split_heads(t):  # (B,S,D) -> (B,H,S,dh)
        return t.reshape(B, S, N_HEADS, D_HEAD).transpose(0, 2, 1, 3)

    q, k, v = (split_heads(x @ w + b[0]) for w, b in ((wq, bq), (wk, bk), (wv, bv)))
    s = jnp.einsum("bhqd,bhkd->bhqk", q, k) / math.sqrt(D_HEAD)
    s = jnp.where(mask[:, None, :, :] > 0.5, s, NEG_INF)
    p = jax.nn.softmax(s, axis=-1)
    ctx = jnp.einsum("bhqk,bhkd->bhqd", p, v).transpose(0, 2, 1, 3).reshape(B, S, D)
    mha = ctx @ wo + bo[0]

    def ln(t, g, b):
        mu = jnp.mean(t, -1, keepdims=True)
        var = jnp.mean((t - mu) ** 2, -1, keepdims=True)
        return (t - mu) * lax.rsqrt(var + LN_EPS) * g[0] + b[0]

    h1 = ln(x + mha, g1, be1)
    f = jnp.maximum(h1 @ w1 + b1[0], 0.0) @ w2 + b2[0]
    return ln(h1 + f, g2, be2), p


if __name__ == "__main__":
    B, S = 2, 8
    key = jax.random.PRNGKey(0)
    kx, kp = jax.random.split(key)

    x = jax.random.normal(kx, (B, S, D_MODEL), jnp.float32)
    # padding mask: sequence 0 has full length 8, sequence 1 has length 5
    lengths = jnp.array([8, 5])
    mask = (jnp.arange(S)[None, :] < lengths[:, None]).astype(jnp.float32)[:, None, :]  # (B,1,S)

    params = make_params(kp)

    out, attn = encoder_layer(x, mask, params)
    out = jax.block_until_ready(out)
    attn = jax.block_until_ready(attn)

    ref_out, ref_attn = reference(x, mask, params)
    assert out.shape == (B, S, D_MODEL) and attn.shape == (B, N_HEADS, S, S)
    # bf16 MXU operands (f32 accumulation) -> compare against the pure-f32 reference at 2e-2.
    assert jnp.allclose(out, ref_out, atol=2e-2, rtol=2e-2)
    assert jnp.allclose(attn, ref_attn, atol=1e-2, rtol=1e-2)

    print("KERNEL_OK")
</pallas_src>

<mosaic_0001>
module attributes {stable_mosaic.version = 11 : i64} {
  func.func @encoder_layer_kernel(%arg0: i32, %arg1: i32, %arg2: memref<1x8x32xf32, #tpu.memory_space<vmem>>, %arg3: memref<1x8x32xf32, #tpu.memory_space<vmem>>, %arg4: memref<1x1x8xf32, #tpu.memory_space<vmem>>, %arg5: memref<32x32xbf16, #tpu.memory_space<vmem>>, %arg6: memref<1x32xf32, #tpu.memory_space<vmem>>, %arg7: memref<32x64xbf16, #tpu.memory_space<vmem>>, %arg8: memref<1x64xf32, #tpu.memory_space<vmem>>, %arg9: memref<32x32xbf16, #tpu.memory_space<vmem>>, %arg10: memref<1x32xf32, #tpu.memory_space<vmem>>, %arg11: memref<1x32xf32, #tpu.memory_space<vmem>>, %arg12: memref<1x32xf32, #tpu.memory_space<vmem>>, %arg13: memref<32x64xbf16, #tpu.memory_space<vmem>>, %arg14: memref<1x64xf32, #tpu.memory_space<vmem>>, %arg15: memref<64x32xbf16, #tpu.memory_space<vmem>>, %arg16: memref<1x32xf32, #tpu.memory_space<vmem>>, %arg17: memref<1x32xf32, #tpu.memory_space<vmem>>, %arg18: memref<1x32xf32, #tpu.memory_space<vmem>>, %arg19: memref<1x8x32xf32, #tpu.memory_space<vmem>>, %arg20: memref<1x4x8x8xf32, #tpu.memory_space<vmem>>) attributes {dimension_semantics = [#tpu.dimension_semantics<parallel>, #tpu.dimension_semantics<parallel>], iteration_bounds = array<i64: 2, 1>, scalar_prefetch = 0 : i64, scratch_operands = 0 : i64, tpu.core_type = #tpu.core_type<tc>, window_params = [{transform_indices = @transform_0, window_bounds = array<i64: 1, 8, 32>}, {transform_indices = @transform_1, window_bounds = array<i64: 1, 8, 32>}, {transform_indices = @transform_2, window_bounds = array<i64: 1, 1, 8>}, {pipeline_mode = #tpu.pipeline_mode<synchronous>, transform_indices = @transform_3, window_bounds = array<i64: 32, 32>}, {pipeline_mode = #tpu.pipeline_mode<synchronous>, transform_indices = @transform_4, window_bounds = array<i64: 1, 32>}, {pipeline_mode = #tpu.pipeline_mode<synchronous>, transform_indices = @transform_5, window_bounds = array<i64: 32, 64>}, {pipeline_mode = #tpu.pipeline_mode<synchronous>, transform_indices = @transform_6, window_bounds = array<i64: 1, 64>}, {pipeline_mode = #tpu.pipeline_mode<synchronous>, transform_indices = @transform_7, window_bounds = array<i64: 32, 32>}, {pipeline_mode = #tpu.pipeline_mode<synchronous>, transform_indices = @transform_8, window_bounds = array<i64: 1, 32>}, {pipeline_mode = #tpu.pipeline_mode<synchronous>, transform_indices = @transform_9, window_bounds = array<i64: 1, 32>}, {pipeline_mode = #tpu.pipeline_mode<synchronous>, transform_indices = @transform_10, window_bounds = array<i64: 1, 32>}, {pipeline_mode = #tpu.pipeline_mode<synchronous>, transform_indices = @transform_11, window_bounds = array<i64: 32, 64>}, {pipeline_mode = #tpu.pipeline_mode<synchronous>, transform_indices = @transform_12, window_bounds = array<i64: 1, 64>}, {pipeline_mode = #tpu.pipeline_mode<synchronous>, transform_indices = @transform_13, window_bounds = array<i64: 64, 32>}, {pipeline_mode = #tpu.pipeline_mode<synchronous>, transform_indices = @transform_14, window_bounds = array<i64: 1, 32>}, {pipeline_mode = #tpu.pipeline_mode<synchronous>, transform_indices = @transform_15, window_bounds = array<i64: 1, 32>}, {pipeline_mode = #tpu.pipeline_mode<synchronous>, transform_indices = @transform_16, window_bounds = array<i64: 1, 32>}, {transform_indices = @transform_17, window_bounds = array<i64: 1, 8, 32>}, {transform_indices = @transform_18, window_bounds = array<i64: 1, 4, 8, 8>}]} {
    %c0 = arith.constant 0 : index
    %c0_0 = arith.constant 0 : index
    %c0_1 = arith.constant 0 : index
    %0 = vector.load %arg2[%c0, %c0_0, %c0_1] : memref<1x8x32xf32, #tpu.memory_space<vmem>>, vector<1x8x32xf32>
    %1 = vector.shape_cast %0 : vector<1x8x32xf32> to vector<8x32xf32>
    %2 = arith.truncf %1 : vector<8x32xf32> to vector<8x32xbf16>
    %c0_2 = arith.constant 0 : index
    %c0_3 = arith.constant 0 : index
    %c0_4 = arith.constant 0 : index
    %3 = vector.load %arg3[%c0_2, %c0_3, %c0_4] : memref<1x8x32xf32, #tpu.memory_space<vmem>>, vector<1x8x32xf32>
    %4 = vector.shape_cast %3 : vector<1x8x32xf32> to vector<8x32xf32>
    %5 = arith.truncf %4 : vector<8x32xf32> to vector<8x32xbf16>
    %c0_5 = arith.constant 0 : index
    %c0_6 = arith.constant 0 : index
    %6 = vector.load %arg5[%c0_5, %c0_6] : memref<32x32xbf16, #tpu.memory_space<vmem>>, vector<32x32xbf16>
    %cst = arith.constant dense<0.000000e+00> : vector<8x32xf32>
    %7 = tpu.matmul %2, %6, %cst {dimension_numbers = #tpu.dot_dimension_numbers<[1], [0], [0], [1], [0, 0, 1, 1], [], []>} : vector<8x32xbf16>, vector<32x32xbf16>, vector<8x32xf32> -> vector<8x32xf32>
    %c0_7 = arith.constant 0 : index
    %c0_8 = arith.constant 0 : index
    %8 = vector.load %arg6[%c0_7, %c0_8] : memref<1x32xf32, #tpu.memory_space<vmem>>, vector<1x32xf32>
    %9 = vector.broadcast %8 : vector<1x32xf32> to vector<8x32xf32>
    %10 = arith.addf %7, %9 : vector<8x32xf32>
    %c0_9 = arith.constant 0 : index
    %c0_10 = arith.constant 0 : index
    %11 = vector.load %arg7[%c0_9, %c0_10] : memref<32x64xbf16, #tpu.memory_space<vmem>>, vector<32x64xbf16>
    %cst_11 = arith.constant dense<0.000000e+00> : vector<8x64xf32>
    %12 = tpu.matmul %5, %11, %cst_11 {dimension_numbers = #tpu.dot_dimension_numbers<[1], [0], [0], [1], [0, 0, 1, 1], [], []>} : vector<8x32xbf16>, vector<32x64xbf16>, vector<8x64xf32> -> vector<8x64xf32>
    %c0_12 = arith.constant 0 : index
    %c0_13 = arith.constant 0 : index
    %13 = vector.load %arg8[%c0_12, %c0_13] : memref<1x64xf32, #tpu.memory_space<vmem>>, vector<1x64xf32>
    %14 = vector.broadcast %13 : vector<1x64xf32> to vector<8x64xf32>
    %15 = arith.addf %12, %14 : vector<8x64xf32>
    %16 = vector.extract_strided_slice %10 {offsets = [0, 0], sizes = [8, 8], strides = [1, 1]} : vector<8x32xf32> to vector<8x8xf32>
    %17 = vector.extract_strided_slice %10 {offsets = [0, 8], sizes = [8, 8], strides = [1, 1]} : vector<8x32xf32> to vector<8x8xf32>
    %18 = vector.extract_strided_slice %10 {offsets = [0, 16], sizes = [8, 8], strides = [1, 1]} : vector<8x32xf32> to vector<8x8xf32>
    %19 = vector.extract_strided_slice %10 {offsets = [0, 24], sizes = [8, 8], strides = [1, 1]} : vector<8x32xf32> to vector<8x8xf32>
    %20 = vector.shape_cast %16 : vector<8x8xf32> to vector<1x8x8xf32>
    %21 = vector.shape_cast %17 : vector<8x8xf32> to vector<1x8x8xf32>
    %22 = vector.shape_cast %18 : vector<8x8xf32> to vector<1x8x8xf32>
    %23 = vector.shape_cast %19 : vector<8x8xf32> to vector<1x8x8xf32>
    %24 = tpu.concatenate %20, %21, %22, %23 in 0 : vector<1x8x8xf32>, vector<1x8x8xf32>, vector<1x8x8xf32>, vector<1x8x8xf32> -> vector<4x8x8xf32>
    %25 = vector.extract_strided_slice %15 {offsets = [0, 0], sizes = [8, 8], strides = [1, 1]} : vector<8x64xf32> to vector<8x8xf32>
    %26 = vector.extract_strided_slice %15 {offsets = [0, 8], sizes = [8, 8], strides = [1, 1]} : vector<8x64xf32> to vector<8x8xf32>
    %27 = vector.extract_strided_slice %15 {offsets = [0, 16], sizes = [8, 8], strides = [1, 1]} : vector<8x64xf32> to vector<8x8xf32>
    %28 = vector.extract_strided_slice %15 {offsets = [0, 24], sizes = [8, 8], strides = [1, 1]} : vector<8x64xf32> to vector<8x8xf32>
    %29 = vector.shape_cast %25 : vector<8x8xf32> to vector<1x8x8xf32>
    %30 = vector.shape_cast %26 : vector<8x8xf32> to vector<1x8x8xf32>
    %31 = vector.shape_cast %27 : vector<8x8xf32> to vector<1x8x8xf32>
    %32 = vector.shape_cast %28 : vector<8x8xf32> to vector<1x8x8xf32>
    %33 = tpu.concatenate %29, %30, %31, %32 in 0 : vector<1x8x8xf32>, vector<1x8x8xf32>, vector<1x8x8xf32>, vector<1x8x8xf32> -> vector<4x8x8xf32>
    %34 = vector.extract_strided_slice %15 {offsets = [0, 32], sizes = [8, 8], strides = [1, 1]} : vector<8x64xf32> to vector<8x8xf32>
    %35 = vector.extract_strided_slice %15 {offsets = [0, 40], sizes = [8, 8], strides = [1, 1]} : vector<8x64xf32> to vector<8x8xf32>
    %36 = vector.extract_strided_slice %15 {offsets = [0, 48], sizes = [8, 8], strides = [1, 1]} : vector<8x64xf32> to vector<8x8xf32>
    %37 = vector.extract_strided_slice %15 {offsets = [0, 56], sizes = [8, 8], strides = [1, 1]} : vector<8x64xf32> to vector<8x8xf32>
    %38 = vector.shape_cast %34 : vector<8x8xf32> to vector<1x8x8xf32>
    %39 = vector.shape_cast %35 : vector<8x8xf32> to vector<1x8x8xf32>
    %40 = vector.shape_cast %36 : vector<8x8xf32> to vector<1x8x8xf32>
    %41 = vector.shape_cast %37 : vector<8x8xf32> to vector<1x8x8xf32>
    %42 = tpu.concatenate %38, %39, %40, %41 in 0 : vector<1x8x8xf32>, vector<1x8x8xf32>, vector<1x8x8xf32>, vector<1x8x8xf32> -> vector<4x8x8xf32>
    %43 = arith.truncf %24 : vector<4x8x8xf32> to vector<4x8x8xbf16>
    %44 = arith.truncf %33 : vector<4x8x8xf32> to vector<4x8x8xbf16>
    %45 = arith.truncf %42 : vector<4x8x8xf32> to vector<4x8x8xbf16>
    "tpu.trace_start"() <{level = 10 : i32, message = "hqd,hkd->hqk"}> : () -> ()
    %cst_14 = arith.constant dense<0.000000e+00> : vector<4x8x8xf32>
    %46 = tpu.matmul %43, %44, %cst_14 {dimension_numbers = #tpu.dot_dimension_numbers<[2], [2], [1], [1], [0, 0, 0, 1, 1, 1], [0], [0]>} : vector<4x8x8xbf16>, vector<4x8x8xbf16>, vector<4x8x8xf32> -> vector<4x8x8xf32>
    "tpu.trace_stop"() : () -> ()
    %c0_15 = arith.constant 0 : index
    %c0_16 = arith.constant 0 : index
    %c0_17 = arith.constant 0 : index
    %47 = vector.load %arg4[%c0_15, %c0_16, %c0_17] : memref<1x1x8xf32, #tpu.memory_space<vmem>>, vector<1x1x8xf32>
    %48 = vector.shape_cast %47 : vector<1x1x8xf32> to vector<1x8xf32>
    %cst_18 = arith.constant 1.000000e+00 : f32
    %49 = vector.broadcast %cst_18 : f32 to vector<1x8xf32>
    %50 = arith.subf %48, %49 : vector<1x8xf32>
    %cst_19 = arith.constant 1.000000e+09 : f32
    %51 = vector.broadcast %cst_19 : f32 to vector<1x8xf32>
    %52 = arith.mulf %50, %51 : vector<1x8xf32>
    %53 = vector.shape_cast %52 : vector<1x8xf32> to vector<1x1x8xf32>
    %54 = vector.broadcast %53 : vector<1x1x8xf32> to vector<4x8x8xf32>
    %55 = arith.addf %46, %54 : vector<4x8x8xf32>
    %cst_20 = arith.constant dense<0xFF800000> : vector<4x8xf32>
    %56 = vector.multi_reduction <maximumf>, %55, %cst_20 [2] : vector<4x8x8xf32> to vector<4x8xf32>
    %57 = vector.shape_cast %56 : vector<4x8xf32> to vector<4x8x1xf32>
    %58 = vector.broadcast %57 : vector<4x8x1xf32> to vector<4x8x8xf32>
    %59 = arith.subf %55, %58 : vector<4x8x8xf32>
    %60 = math.exp %59 : vector<4x8x8xf32>
    %cst_21 = arith.constant dense<0.000000e+00> : vector<4x8xf32>
    %61 = vector.multi_reduction <add>, %60, %cst_21 [2] : vector<4x8x8xf32> to vector<4x8xf32>
    %62 = vector.shape_cast %61 : vector<4x8xf32> to vector<4x8x1xf32>
    %63 = tpu.reciprocal %62 {approx = true} : vector<4x8x1xf32> -> vector<4x8x1xf32>
    %64 = vector.broadcast %63 : vector<4x8x1xf32> to vector<4x8x8xf32>
    %65 = arith.mulf %60, %64 : vector<4x8x8xf32>
    %c0_22 = arith.constant 0 : index
    %c0_23 = arith.constant 0 : index
    %c0_24 = arith.constant 0 : index
    %c0_25 = arith.constant 0 : index
    %66 = vector.load %arg20[%c0_22, %c0_23, %c0_24, %c0_25] : memref<1x4x8x8xf32, #tpu.memory_space<vmem>>, vector<1x4x8x8xf32>
    %67 = vector.shape_cast %66 : vector<1x4x8x8xf32> to vector<4x8x8xf32>
    %68 = vector.shape_cast %65 : vector<4x8x8xf32> to vector<1x4x8x8xf32>
    tpu.vector_store %arg20[%c0_22, %c0_23, %c0_24, %c0_25], %68 {strides = array<i32>} : memref<1x4x8x8xf32, #tpu.memory_space<vmem>>, vector<1x4x8x8xf32>,
    %69 = arith.truncf %65 : vector<4x8x8xf32> to vector<4x8x8xbf16>
    "tpu.trace_start"() <{level = 10 : i32, message = "hqk,hkd->hqd"}> : () -> ()
    %cst_26 = arith.constant dense<0.000000e+00> : vector<4x8x8xf32>
    %70 = tpu.matmul %69, %45, %cst_26 {dimension_numbers = #tpu.dot_dimension_numbers<[2], [1], [1], [2], [0, 0, 0, 1, 1, 2], [0], [0]>} : vector<4x8x8xbf16>, vector<4x8x8xbf16>, vector<4x8x8xf32> -> vector<4x8x8xf32>
    "tpu.trace_stop"() : () -> ()
    %71 = vector.extract_strided_slice %70 {offsets = [0, 0, 0], sizes = [1, 8, 8], strides = [1, 1, 1]} : vector<4x8x8xf32> to vector<1x8x8xf32>
    %72 = vector.shape_cast %71 : vector<1x8x8xf32> to vector<8x8xf32>
    %73 = vector.extract_strided_slice %70 {offsets = [1, 0, 0], sizes = [1, 8, 8], strides = [1, 1, 1]} : vector<4x8x8xf32> to vector<1x8x8xf32>
    %74 = vector.shape_cast %73 : vector<1x8x8xf32> to vector<8x8xf32>
    %75 = vector.extract_strided_slice %70 {offsets = [2, 0, 0], sizes = [1, 8, 8], strides = [1, 1, 1]} : vector<4x8x8xf32> to vector<1x8x8xf32>
    %76 = vector.shape_cast %75 : vector<1x8x8xf32> to vector<8x8xf32>
    %77 = vector.extract_strided_slice %70 {offsets = [3, 0, 0], sizes = [1, 8, 8], strides = [1, 1, 1]} : vector<4x8x8xf32> to vector<1x8x8xf32>
    %78 = vector.shape_cast %77 : vector<1x8x8xf32> to vector<8x8xf32>
    %79 = tpu.concatenate %72, %74, %76, %78 in 1 : vector<8x8xf32>, vector<8x8xf32>, vector<8x8xf32>, vector<8x8xf32> -> vector<8x32xf32>
    %80 = arith.truncf %79 : vector<8x32xf32> to vector<8x32xbf16>
    %c0_27 = arith.constant 0 : index
    %c0_28 = arith.constant 0 : index
    %81 = vector.load %arg9[%c0_27, %c0_28] : memref<32x32xbf16, #tpu.memory_space<vmem>>, vector<32x32xbf16>
    %cst_29 = arith.constant dense<0.000000e+00> : vector<8x32xf32>
    %82 = tpu.matmul %80, %81, %cst_29 {dimension_numbers = #tpu.dot_dimension_numbers<[1], [0], [0], [1], [0, 0, 1, 1], [], []>} : vector<8x32xbf16>, vector<32x32xbf16>, vector<8x32xf32> -> vector<8x32xf32>
    %c0_30 = arith.constant 0 : index
    %c0_31 = arith.constant 0 : index
    %83 = vector.load %arg10[%c0_30, %c0_31] : memref<1x32xf32, #tpu.memory_space<vmem>>, vector<1x32xf32>
    %84 = vector.broadcast %83 : vector<1x32xf32> to vector<8x32xf32>
    %85 = arith.addf %82, %84 : vector<8x32xf32>
    %86 = arith.addf %1, %85 : vector<8x32xf32>
    %c0_32 = arith.constant 0 : index
    %c0_33 = arith.constant 0 : index
    %87 = vector.load %arg11[%c0_32, %c0_33] : memref<1x32xf32, #tpu.memory_space<vmem>>, vector<1x32xf32>
    %c0_34 = arith.constant 0 : index
    %c0_35 = arith.constant 0 : index
    %88 = vector.load %arg12[%c0_34, %c0_35] : memref<1x32xf32, #tpu.memory_space<vmem>>, vector<1x32xf32>
    %cst_36 = arith.constant dense<0.000000e+00> : vector<8xf32>
    %89 = vector.multi_reduction <add>, %86, %cst_36 [1] : vector<8x32xf32> to vector<8xf32>
    %90 = vector.shape_cast %89 : vector<8xf32> to vector<8x1xf32>
    %cst_37 = arith.constant 3.200000e+01 : f32
    %91 = vector.broadcast %cst_37 : f32 to vector<8x1xf32>
    %92 = arith.divf %90, %91 : vector<8x1xf32>
    %93 = vector.broadcast %92 : vector<8x1xf32> to vector<8x32xf32>
    %94 = arith.subf %86, %93 : vector<8x32xf32>
    %95 = vector.broadcast %92 : vector<8x1xf32> to vector<8x32xf32>
    %96 = arith.subf %86, %95 : vector<8x32xf32>
    %97 = arith.mulf %94, %96 : vector<8x32xf32>
    %cst_38 = arith.constant dense<0.000000e+00> : vector<8xf32>
    %98 = vector.multi_reduction <add>, %97, %cst_38 [1] : vector<8x32xf32> to vector<8xf32>
    %99 = vector.shape_cast %98 : vector<8xf32> to vector<8x1xf32>
    %cst_39 = arith.constant 3.200000e+01 : f32
    %100 = vector.broadcast %cst_39 : f32 to vector<8x1xf32>
    %101 = arith.divf %99, %100 : vector<8x1xf32>
    %102 = vector.broadcast %92 : vector<8x1xf32> to vector<8x32xf32>
    %103 = arith.subf %86, %102 : vector<8x32xf32>
    %cst_40 = arith.constant 9.99999974E-6 : f32
    %104 = vector.broadcast %cst_40 : f32 to vector<8x1xf32>
    %105 = arith.addf %101, %104 : vector<8x1xf32>
    %106 = math.rsqrt %105 : vector<8x1xf32>
    %107 = vector.broadcast %106 : vector<8x1xf32> to vector<8x32xf32>
    %108 = arith.mulf %103, %107 : vector<8x32xf32>
    %109 = vector.broadcast %87 : vector<1x32xf32> to vector<8x32xf32>
    %110 = arith.mulf %108, %109 : vector<8x32xf32>
    %111 = vector.broadcast %88 : vector<1x32xf32> to vector<8x32xf32>
    %112 = arith.addf %110, %111 : vector<8x32xf32>
    %113 = arith.truncf %112 : vector<8x32xf32> to vector<8x32xbf16>
    %c0_41 = arith.constant 0 : index
    %c0_42 = arith.constant 0 : index
    %114 = vector.load %arg13[%c0_41, %c0_42] : memref<32x64xbf16, #tpu.memory_space<vmem>>, vector<32x64xbf16>
    %cst_43 = arith.constant dense<0.000000e+00> : vector<8x64xf32>
    %115 = tpu.matmul %113, %114, %cst_43 {dimension_numbers = #tpu.dot_dimension_numbers<[1], [0], [0], [1], [0, 0, 1, 1], [], []>} : vector<8x32xbf16>, vector<32x64xbf16>, vector<8x64xf32> -> vector<8x64xf32>
    %c0_44 = arith.constant 0 : index
    %c0_45 = arith.constant 0 : index
    %116 = vector.load %arg14[%c0_44, %c0_45] : memref<1x64xf32, #tpu.memory_space<vmem>>, vector<1x64xf32>
    %117 = vector.broadcast %116 : vector<1x64xf32> to vector<8x64xf32>
    %118 = arith.addf %115, %117 : vector<8x64xf32>
    %cst_46 = arith.constant 0.000000e+00 : f32
    %119 = vector.broadcast %cst_46 : f32 to vector<8x64xf32>
    %120 = arith.maximumf %118, %119 : vector<8x64xf32>
    %121 = arith.truncf %120 : vector<8x64xf32> to vector<8x64xbf16>
    %c0_47 = arith.constant 0 : index
    %c0_48 = arith.constant 0 : index
    %122 = vector.load %arg15[%c0_47, %c0_48] : memref<64x32xbf16, #tpu.memory_space<vmem>>, vector<64x32xbf16>
    %cst_49 = arith.constant dense<0.000000e+00> : vector<8x32xf32>
    %123 = tpu.matmul %121, %122, %cst_49 {dimension_numbers = #tpu.dot_dimension_numbers<[1], [0], [0], [1], [0, 0, 1, 1], [], []>} : vector<8x64xbf16>, vector<64x32xbf16>, vector<8x32xf32> -> vector<8x32xf32>
    %c0_50 = arith.constant 0 : index
    %c0_51 = arith.constant 0 : index
    %124 = vector.load %arg16[%c0_50, %c0_51] : memref<1x32xf32, #tpu.memory_space<vmem>>, vector<1x32xf32>
    %125 = vector.broadcast %124 : vector<1x32xf32> to vector<8x32xf32>
    %126 = arith.addf %123, %125 : vector<8x32xf32>
    %127 = arith.addf %112, %126 : vector<8x32xf32>
    %c0_52 = arith.constant 0 : index
    %c0_53 = arith.constant 0 : index
    %128 = vector.load %arg17[%c0_52, %c0_53] : memref<1x32xf32, #tpu.memory_space<vmem>>, vector<1x32xf32>
    %c0_54 = arith.constant 0 : index
    %c0_55 = arith.constant 0 : index
    %129 = vector.load %arg18[%c0_54, %c0_55] : memref<1x32xf32, #tpu.memory_space<vmem>>, vector<1x32xf32>
    %cst_56 = arith.constant dense<0.000000e+00> : vector<8xf32>
    %130 = vector.multi_reduction <add>, %127, %cst_56 [1] : vector<8x32xf32> to vector<8xf32>
    %131 = vector.shape_cast %130 : vector<8xf32> to vector<8x1xf32>
    %cst_57 = arith.constant 3.200000e+01 : f32
    %132 = vector.broadcast %cst_57 : f32 to vector<8x1xf32>
    %133 = arith.divf %131, %132 : vector<8x1xf32>
    %134 = vector.broadcast %133 : vector<8x1xf32> to vector<8x32xf32>
    %135 = arith.subf %127, %134 : vector<8x32xf32>
    %136 = vector.broadcast %133 : vector<8x1xf32> to vector<8x32xf32>
    %137 = arith.subf %127, %136 : vector<8x32xf32>
    %138 = arith.mulf %135, %137 : vector<8x32xf32>
    %cst_58 = arith.constant dense<0.000000e+00> : vector<8xf32>
    %139 = vector.multi_reduction <add>, %138, %cst_58 [1] : vector<8x32xf32> to vector<8xf32>
    %140 = vector.shape_cast %139 : vector<8xf32> to vector<8x1xf32>
    %cst_59 = arith.constant 3.200000e+01 : f32
    %141 = vector.broadcast %cst_59 : f32 to vector<8x1xf32>
    %142 = arith.divf %140, %141 : vector<8x1xf32>
    %143 = vector.broadcast %133 : vector<8x1xf32> to vector<8x32xf32>
    %144 = arith.subf %127, %143 : vector<8x32xf32>
    %cst_60 = arith.constant 9.99999974E-6 : f32
    %145 = vector.broadcast %cst_60 : f32 to vector<8x1xf32>
    %146 = arith.addf %142, %145 : vector<8x1xf32>
    %147 = math.rsqrt %146 : vector<8x1xf32>
    %148 = vector.broadcast %147 : vector<8x1xf32> to vector<8x32xf32>
    %149 = arith.mulf %144, %148 : vector<8x32xf32>
    %150 = vector.broadcast %128 : vector<1x32xf32> to vector<8x32xf32>
    %151 = arith.mulf %149, %150 : vector<8x32xf32>
    %152 = vector.broadcast %129 : vector<1x32xf32> to vector<8x32xf32>
    %153 = arith.addf %151, %152 : vector<8x32xf32>
    %c0_61 = arith.constant 0 : index
    %c0_62 = arith.constant 0 : index
    %c0_63 = arith.constant 0 : index
    %154 = vector.load %arg19[%c0_61, %c0_62, %c0_63] : memref<1x8x32xf32, #tpu.memory_space<vmem>>, vector<1x8x32xf32>
    %155 = vector.shape_cast %154 : vector<1x8x32xf32> to vector<8x32xf32>
    %156 = vector.shape_cast %153 : vector<8x32xf32> to vector<1x8x32xf32>
    tpu.vector_store %arg19[%c0_61, %c0_62, %c0_63], %156 {strides = array<i32>} : memref<1x8x32xf32, #tpu.memory_space<vmem>>, vector<1x8x32xf32>,
    return
  }
  func.func @transform_0(%arg0: i32, %arg1: i32) -> (i32, i32, i32) {
    %c0_i32 = arith.constant 0 : i32
    %c0_i32_0 = arith.constant 0 : i32
    return %arg0, %arg1, %c0_i32 : i32, i32, i32
  }
  func.func @transform_1(%arg0: i32, %arg1: i32) -> (i32, i32, i32) {
    %c0_i32 = arith.constant 0 : i32
    %c0_i32_0 = arith.constant 0 : i32
    %c0_i32_1 = arith.constant 0 : i32
    return %arg0, %c0_i32, %c0_i32_0 : i32, i32, i32
  }
  func.func @transform_2(%arg0: i32, %arg1: i32) -> (i32, i32, i32) {
    %c0_i32 = arith.constant 0 : i32
    %c0_i32_0 = arith.constant 0 : i32
    %c0_i32_1 = arith.constant 0 : i32
    return %arg0, %c0_i32, %c0_i32_0 : i32, i32, i32
  }
  func.func @transform_3(%arg0: i32, %arg1: i32) -> (i32, i32) {
    %c0_i32 = arith.constant 0 : i32
    %c0_i32_0 = arith.constant 0 : i32
    %c0_i32_1 = arith.constant 0 : i32
    return %c0_i32, %c0_i32_0 : i32, i32
  }
  func.func @transform_4(%arg0: i32, %arg1: i32) -> (i32, i32) {
    %c0_i32 = arith.constant 0 : i32
    %c0_i32_0 = arith.constant 0 : i32
    %c0_i32_1 = arith.constant 0 : i32
    return %c0_i32, %c0_i32_0 : i32, i32
  }
  func.func @transform_5(%arg0: i32, %arg1: i32) -> (i32, i32) {
    %c0_i32 = arith.constant 0 : i32
    %c0_i32_0 = arith.constant 0 : i32
    %c0_i32_1 = arith.constant 0 : i32
    return %c0_i32, %c0_i32_0 : i32, i32
  }
  func.func @transform_6(%arg0: i32, %arg1: i32) -> (i32, i32) {
    %c0_i32 = arith.constant 0 : i32
    %c0_i32_0 = arith.constant 0 : i32
    %c0_i32_1 = arith.constant 0 : i32
    return %c0_i32, %c0_i32_0 : i32, i32
  }
  func.func @transform_7(%arg0: i32, %arg1: i32) -> (i32, i32) {
    %c0_i32 = arith.constant 0 : i32
    %c0_i32_0 = arith.constant 0 : i32
    %c0_i32_1 = arith.constant 0 : i32
    return %c0_i32, %c0_i32_0 : i32, i32
  }
  func.func @transform_8(%arg0: i32, %arg1: i32) -> (i32, i32) {
    %c0_i32 = arith.constant 0 : i32
    %c0_i32_0 = arith.constant 0 : i32
    %c0_i32_1 = arith.constant 0 : i32
    return %c0_i32, %c0_i32_0 : i32, i32
  }
  func.func @transform_9(%arg0: i32, %arg1: i32) -> (i32, i32) {
    %c0_i32 = arith.constant 0 : i32
    %c0_i32_0 = arith.constant 0 : i32
    %c0_i32_1 = arith.constant 0 : i32
    return %c0_i32, %c0_i32_0 : i32, i32
  }
  func.func @transform_10(%arg0: i32, %arg1: i32) -> (i32, i32) {
    %c0_i32 = arith.constant 0 : i32
    %c0_i32_0 = arith.constant 0 : i32
    %c0_i32_1 = arith.constant 0 : i32
    return %c0_i32, %c0_i32_0 : i32, i32
  }
  func.func @transform_11(%arg0: i32, %arg1: i32) -> (i32, i32) {
    %c0_i32 = arith.constant 0 : i32
    %c0_i32_0 = arith.constant 0 : i32
    %c0_i32_1 = arith.constant 0 : i32
    return %c0_i32, %c0_i32_0 : i32, i32
  }
  func.func @transform_12(%arg0: i32, %arg1: i32) -> (i32, i32) {
    %c0_i32 = arith.constant 0 : i32
    %c0_i32_0 = arith.constant 0 : i32
    %c0_i32_1 = arith.constant 0 : i32
    return %c0_i32, %c0_i32_0 : i32, i32
  }
  func.func @transform_13(%arg0: i32, %arg1: i32) -> (i32, i32) {
    %c0_i32 = arith.constant 0 : i32
    %c0_i32_0 = arith.constant 0 : i32
    %c0_i32_1 = arith.constant 0 : i32
    return %c0_i32, %c0_i32_0 : i32, i32
  }
  func.func @transform_14(%arg0: i32, %arg1: i32) -> (i32, i32) {
    %c0_i32 = arith.constant 0 : i32
    %c0_i32_0 = arith.constant 0 : i32
    %c0_i32_1 = arith.constant 0 : i32
    return %c0_i32, %c0_i32_0 : i32, i32
  }
  func.func @transform_15(%arg0: i32, %arg1: i32) -> (i32, i32) {
    %c0_i32 = arith.constant 0 : i32
    %c0_i32_0 = arith.constant 0 : i32
    %c0_i32_1 = arith.constant 0 : i32
    return %c0_i32, %c0_i32_0 : i32, i32
  }
  func.func @transform_16(%arg0: i32, %arg1: i32) -> (i32, i32) {
    %c0_i32 = arith.constant 0 : i32
    %c0_i32_0 = arith.constant 0 : i32
    %c0_i32_1 = arith.constant 0 : i32
    return %c0_i32, %c0_i32_0 : i32, i32
  }
  func.func @transform_17(%arg0: i32, %arg1: i32) -> (i32, i32, i32) {
    %c0_i32 = arith.constant 0 : i32
    %c0_i32_0 = arith.constant 0 : i32
    return %arg0, %arg1, %c0_i32 : i32, i32, i32
  }
  func.func @transform_18(%arg0: i32, %arg1: i32) -> (i32, i32, i32, i32) {
    %c0_i32 = arith.constant 0 : i32
    %c0_i32_0 = arith.constant 0 : i32
    %c0_i32_1 = arith.constant 0 : i32
    return %arg0, %c0_i32, %arg1, %c0_i32_0 : i32, i32, i32, i32
  }
}

</mosaic_0001>

<llo_original>
// kernel: tpu_custom_call.1
$region0: #{tpu_custom_call.1}
  #allocation0 [shape = 'u32[]', space=smem, size = 0x4, offset = 0x4, fixed_abs, tag = 'smem constant byte address 0x4 - core index']
  #allocation1 [shape = 'u32[144,128]{1,0:T(1,128)}', space=vmem, size = 0x12000, scoped, tag = 'internal scratch']
  %s0 = inlined_call_operand.vmem [shape: f32[2,8,32], index: 0, kind: input, shape index: {}]
  %s1 = inlined_call_operand.vmem [shape: f32[2,8,32], index: 1, kind: input, shape index: {}]
  %s2 = inlined_call_operand.vmem [shape: f32[2,1,8], index: 2, kind: input, shape index: {}]
  %s3 = inlined_call_operand.vmem [shape: bf16[32,32], index: 3, kind: input, shape index: {}]
  %s4 = inlined_call_operand.hbm [shape: f32[1,32], index: 4, kind: input, shape index: {}]
  %s5 = inlined_call_operand.hbm [shape: bf16[32,64], index: 5, kind: input, shape index: {}]
  %s6 = inlined_call_operand.hbm [shape: f32[1,64], index: 6, kind: input, shape index: {}]
  %s7 = inlined_call_operand.hbm [shape: bf16[32,32], index: 7, kind: input, shape index: {}]
  %s8 = inlined_call_operand.hbm [shape: f32[1,32], index: 8, kind: input, shape index: {}]
  %s9 = inlined_call_operand.hbm [shape: f32[1,32], index: 9, kind: input, shape index: {}]
  %s10 = inlined_call_operand.vmem [shape: f32[1,32], index: 10, kind: input, shape index: {}]
  %s11 = inlined_call_operand.vmem [shape: bf16[32,64], index: 11, kind: input, shape index: {}]
  %s12 = inlined_call_operand.vmem [shape: f32[1,64], index: 12, kind: input, shape index: {}]
  %s13 = inlined_call_operand.vmem [shape: bf16[64,32], index: 13, kind: input, shape index: {}]
  %s14 = inlined_call_operand.vmem [shape: f32[1,32], index: 14, kind: input, shape index: {}]
  %s15 = inlined_call_operand.vmem [shape: f32[1,32], index: 15, kind: input, shape index: {}]
  %s16 = inlined_call_operand.vmem [shape: f32[1,32], index: 16, kind: input, shape index: {}]
  %s17 = inlined_call_operand.hbm [shape: f32[2,8,32], index: 17, kind: output, shape index: {0}]
  %s18 = inlined_call_operand.hbm [shape: f32[2,4,8,8], index: 18, kind: output, shape index: {1}]
  %19 = xla_tuple %s17, %s18
  %s20 = sld [smem:[#allocation0]]
  $region133: #{tpu_custom_call.1} parent=0
    _
  %s22 = ssub.s32 1, %s20
  %s23 = scalar_select 0, %s22, %s20
  $region1: #{tpu_custom_call.1} parent=0
    #allocation2 [shape = 'u8[512]{0}', space=vmem, size = 0x400, scoped, tag = 'input window, operand 4, single buffered']
    #allocation3 [shape = 's32[2]{0}', space=sflag, size = 0x8, scoped, tag = 'scoped memory for tpu_custom_call.1']
    #allocation4 [shape = 's32[2]{0}', space=sflag, size = 0x8, scoped, tag = 'scoped memory for tpu_custom_call.1']
    #allocation5 [shape = 'u8[8192]{0}', space=vmem, size = 0x2000, scoped, tag = 'input window, operand 5, single buffered']
    #allocation6 [shape = 's32[1]{0}', space=sflag, size = 0x4, scoped, tag = 'scoped memory for tpu_custom_call.1']
    #allocation7 [shape = 'u8[512]{0}', space=vmem, size = 0x400, scoped, tag = 'input window, operand 6, single buffered']
    #allocation8 [shape = 'u8[8192]{0}', space=vmem, size = 0x2000, scoped, tag = 'input window, operand 7, single buffered']
    #allocation9 [shape = 's32[1]{0}', space=sflag, size = 0x4, scoped, tag = 'scoped memory for tpu_custom_call.1']
    #allocation10 [shape = 'u8[512]{0}', space=vmem, size = 0x400, scoped, tag = 'input window, operand 8, single buffered']
    #allocation11 [shape = 'u8[512]{0}', space=vmem, size = 0x400, scoped, tag = 'input window, operand 9, single buffered']
    #allocation12 [shape = 's32[1]{0}', space=sflag, size = 0x4, scoped, tag = 'scoped memory for tpu_custom_call.1']
    #allocation13 [shape = 'u8[8192]{0}', space=vmem, size = 0x2000, scoped, tag = 'output window, operand 0']
    #allocation14 [shape = 'u8[32768]{0}', space=vmem, size = 0x8000, scoped, tag = 'output window, operand 1']
    #allocation15 [shape = 's32[2]{0}', space=sflag, size = 0x8, scoped, tag = 'scoped memory for tpu_custom_call.1']
    %24 = vsyncpa [#allocation3], 0
    %25 = vsyncpa [#allocation6], 0
    %26 = vsyncpa [#allocation9], 0
    %27 = vsyncpa [#allocation12], 0
    %28 = vsyncpa [#allocation4], 0
    %s29 = scalar_lea.sflag [#allocation4], 1
    %30 = vsyncpa %s29, 0
    %31 = vsyncpa [#allocation15], 0
    %s32 = scalar_lea.sflag [#allocation15], 1
    %33 = vsyncpa %s32, 0
    loop: start=0, step=1, limit=4
    $region2: #{tpu_custom_call.1} parent=1 // loop_pre_header
      _
    $region3: #{tpu_custom_call.1} parent=1 // loop_header
      %s35 = sphi 0, %s39
      %p36 = scmp.ge.s32.totalorder %s35, 4
      %s42 = sphi 0, %s54
      %s43 = sphi 0, %s50
      %s44 = sphi 0, %s42
      %s45 = sphi 0, %s43
      %s46 = sphi 0, %s44
      %s47 = sphi 0, %s45
      %s59 = sphi 0, %s61
      %s62 = sphi 0, %s59
      %s63 = sphi 0, %s62
      %s79 = sphi 0, %s63
      %s85 = sphi 0, %s87
      %s88 = sphi 0, %s85
      %s89 = sphi 0, %s88
      %s105 = sphi 0, %s89
      %s111 = sphi 0, %s113
      %s114 = sphi 0, %s111
      %s115 = sphi 0, %s114
      %s131 = sphi 0, %s115
      %s135 = sphi 0, %s135
      %s137 = sphi 0, %s135
      %s138 = sphi 0, %s137
      %s152 = sphi 0, %s138
      %s156 = sphi 0, %s156
      %s158 = sphi 0, %s156
      %s159 = sphi 0, %s158
      %s173 = sphi 0, %s159
      %s177 = sphi 0, %s177
      %s179 = sphi 0, %s177
      %s180 = sphi 0, %s179
      %s194 = sphi 0, %s180
      %s198 = sphi 0, %s198
      %s200 = sphi 0, %s198
      %s201 = sphi 0, %s200
      %s215 = sphi 0, %s201
      %s219 = sphi 0, %s219
      %s221 = sphi 0, %s219
      %s222 = sphi 0, %s221
      %s236 = sphi 0, %s222
      %s240 = sphi 0, %s240
      %s242 = sphi 0, %s240
      %s243 = sphi 0, %s242
      %s257 = sphi 0, %s243
      %s261 = sphi 0, %s261
      %s263 = sphi 0, %s261
      %s264 = sphi 0, %s263
      %s278 = sphi 0, %s264
      %s282 = sphi 0, %s282
      %s284 = sphi 0, %s282
      %s285 = sphi 0, %s284
      %s299 = sphi 0, %s285
      %s303 = sphi 0, %s303
      %s305 = sphi 0, %s303
      %s306 = sphi 0, %s305
      %s320 = sphi 0, %s306
      %s324 = sphi 0, %s324
      %s326 = sphi 0, %s324
      %s327 = sphi 0, %s326
      %s341 = sphi 0, %s327
      %s345 = sphi 0, %s345
      %s347 = sphi 0, %s345
      %s348 = sphi 0, %s347
      %s362 = sphi 0, %s348
      %s366 = sphi 0, %s366
      %s368 = sphi 0, %s366
      %s369 = sphi 0, %s368
      %s383 = sphi 0, %s369
      %s387 = sphi 0, %s387
      %s389 = sphi 0, %s387
      %s390 = sphi 0, %s389
      %s404 = sphi 0, %s390
      %s408 = sphi 0, %s408
      %s410 = sphi 0, %s408
      %s411 = sphi 0, %s410
      %s425 = sphi 0, %s411
      %s433 = sphi 0, %s435
      %s436 = sphi 0, %s433
      %s437 = sphi 0, %s436
      %s453 = sphi 0, %s437
      %s461 = sphi 0, %s463
      %s464 = sphi 0, %s461
      %s465 = sphi 0, %s464
      %s481 = sphi 0, %s465
    $region4: #{tpu_custom_call.1} parent=1 // loop_header_branch
      %38 = sbr.rel (%p36) target = $region8
    $region5: #{tpu_custom_call.1} parent=1 // loop_body
      %s40 = ssub.s32 %s35, 1
      %s41 = ssub.s32 %s35, 2
      %s48 = sadd.s32 1, %s43
      %p49 = scmp.ge.s32.totalorder %s48, 1
      %s50 = scalar_select %p49, 0, %s48
      %s51 = sadd.s32 1, %s42
      %s52 = scalar_select %p49, %s51, %s42
      %p53 = scmp.ge.s32.totalorder %s52, 2
      %s54 = scalar_select %p53, 0, %s52
      %s55 = ssub.s32 %s42, %s54
      %s56 = ssub.s32 %s43, %s50
      %s57 = sor.u32 %s55, %s56
      %p58 = scmp.eq.s32.totalorder %s57, 0
      %s60 = sadd.s32 %s59, 1
      %s61 = scalar_select %p58, %s59, %s60
      %p64 = pneg %p58
      %p65 = scmp.eq.s32.totalorder %s35, 1
      %p66 = por %p64, %p65
      %p67 = scmp.ne.s32.totalorder %s59, %s62
      %p68 = scmp.eq.s32.totalorder %s35, 0
      %p69 = por %p67, %p68
      %p70 = scmp.ne.s32.totalorder %s59, %s62
      %p71 = scmp.eq.s32.totalorder %s40, 1
      %p72 = por %p70, %p71
      %p73 = scmp.ne.s32.totalorder %s62, %s63
      %p74 = scmp.eq.s32.totalorder %s40, 0
      %p75 = por %p73, %p74
      %p76 = scmp.ne.s32.totalorder %s62, %s63
      %p77 = scmp.eq.s32.totalorder %s41, 1
      %p78 = por %p76, %p77
      %p80 = scmp.ne.s32.totalorder %s63, %s79
      %p81 = scmp.eq.s32.totalorder %s41, 0
      %p82 = por %p80, %p81
      %s83 = ssub.s32 %s42, %s54
      %p84 = scmp.eq.s32.totalorder %s83, 0
      %s86 = sadd.s32 %s85, 1
      %s87 = scalar_select %p84, %s85, %s86
      %p90 = pneg %p84
      %p91 = scmp.eq.s32.totalorder %s35, 1
      %p92 = por %p90, %p91
      %p93 = scmp.ne.s32.totalorder %s85, %s88
      %p94 = scmp.eq.s32.totalorder %s35, 0
      %p95 = por %p93, %p94
      %p96 = scmp.ne.s32.totalorder %s85, %s88
      %p97 = scmp.eq.s32.totalorder %s40, 1
      %p98 = por %p96, %p97
      %p99 = scmp.ne.s32.totalorder %s88, %s89
      %p100 = scmp.eq.s32.totalorder %s40, 0
      %p101 = por %p99, %p100
      %p102 = scmp.ne.s32.totalorder %s88, %s89
      %p103 = scmp.eq.s32.totalorder %s41, 1
      %p104 = por %p102, %p103
      %p106 = scmp.ne.s32.totalorder %s89, %s105
      %p107 = scmp.eq.s32.totalorder %s41, 0
      %p108 = por %p106, %p107
      %s109 = ssub.s32 %s42, %s54
      %p110 = scmp.eq.s32.totalorder %s109, 0
      %s112 = sadd.s32 %s111, 1
      %s113 = scalar_select %p110, %s111, %s112
      %p116 = pneg %p110
      %p117 = scmp.eq.s32.totalorder %s35, 1
      %p118 = por %p116, %p117
      %p119 = scmp.ne.s32.totalorder %s111, %s114
      %p120 = scmp.eq.s32.totalorder %s35, 0
      %p121 = por %p119, %p120
      %p122 = scmp.ne.s32.totalorder %s111, %s114
      %p123 = scmp.eq.s32.totalorder %s40, 1
      %p124 = por %p122, %p123
      %p125 = scmp.ne.s32.totalorder %s114, %s115
      %p126 = scmp.eq.s32.totalorder %s40, 0
      %p127 = por %p125, %p126
      %p128 = scmp.ne.s32.totalorder %s114, %s115
      %p129 = scmp.eq.s32.totalorder %s41, 1
      %p130 = por %p128, %p129
      %p132 = scmp.ne.s32.totalorder %s115, %s131
      %p133 = scmp.eq.s32.totalorder %s41, 0
      %p134 = por %p132, %p133
      %s136 = sadd.s32 %s135, 1
      %p139 = scmp.eq.s32.totalorder %s35, 1
      %p140 = scmp.ne.s32.totalorder %s135, %s137
      %p141 = scmp.eq.s32.totalorder %s35, 0
      %p142 = por %p140, %p141
      %p143 = scmp.ne.s32.totalorder %s135, %s137
      %p144 = scmp.eq.s32.totalorder %s40, 1
      %p145 = por %p143, %p144
      %p146 = scmp.ne.s32.totalorder %s137, %s138
      %p147 = scmp.eq.s32.totalorder %s40, 0
      %p148 = por %p146, %p147
      %p149 = scmp.ne.s32.totalorder %s137, %s138
      %p150 = scmp.eq.s32.totalorder %s41, 1
      %p151 = por %p149, %p150
      %p153 = scmp.ne.s32.totalorder %s138, %s152
      %p154 = scmp.eq.s32.totalorder %s41, 0
      %p155 = por %p153, %p154
      %s157 = sadd.s32 %s156, 1
      %p160 = scmp.eq.s32.totalorder %s35, 1
      %p161 = scmp.ne.s32.totalorder %s156, %s158
      %p162 = scmp.eq.s32.totalorder %s35, 0
      %p163 = por %p161, %p162
      %p164 = scmp.ne.s32.totalorder %s156, %s158
      %p165 = scmp.eq.s32.totalorder %s40, 1
      %p166 = por %p164, %p165
      %p167 = scmp.ne.s32.totalorder %s158, %s159
      %p168 = scmp.eq.s32.totalorder %s40, 0
      %p169 = por %p167, %p168
      %p170 = scmp.ne.s32.totalorder %s158, %s159
      %p171 = scmp.eq.s32.totalorder %s41, 1
      %p172 = por %p170, %p171
      %p174 = scmp.ne.s32.totalorder %s159, %s173
      %p175 = scmp.eq.s32.totalorder %s41, 0
      %p176 = por %p174, %p175
      %s178 = sadd.s32 %s177, 1
      %p181 = scmp.eq.s32.totalorder %s35, 1
      %p182 = scmp.ne.s32.totalorder %s177, %s179
      %p183 = scmp.eq.s32.totalorder %s35, 0
      %p184 = por %p182, %p183
      %p185 = scmp.ne.s32.totalorder %s177, %s179
      %p186 = scmp.eq.s32.totalorder %s40, 1
      %p187 = por %p185, %p186
      %p188 = scmp.ne.s32.totalorder %s179, %s180
      %p189 = scmp.eq.s32.totalorder %s40, 0
      %p190 = por %p188, %p189
      %p191 = scmp.ne.s32.totalorder %s179, %s180
      %p192 = scmp.eq.s32.totalorder %s41, 1
      %p193 = por %p191, %p192
      %p195 = scmp.ne.s32.totalorder %s180, %s194
      %p196 = scmp.eq.s32.totalorder %s41, 0
      %p197 = por %p195, %p196
      %s199 = sadd.s32 %s198, 1
      %p202 = scmp.eq.s32.totalorder %s35, 1
      %p203 = scmp.ne.s32.totalorder %s198, %s200
      %p204 = scmp.eq.s32.totalorder %s35, 0
      %p205 = por %p203, %p204
      %p206 = scmp.ne.s32.totalorder %s198, %s200
      %p207 = scmp.eq.s32.totalorder %s40, 1
      %p208 = por %p206, %p207
      %p209 = scmp.ne.s32.totalorder %s200, %s201
      %p210 = scmp.eq.s32.totalorder %s40, 0
      %p211 = por %p209, %p210
      %p212 = scmp.ne.s32.totalorder %s200, %s201
      %p213 = scmp.eq.s32.totalorder %s41, 1
      %p214 = por %p212, %p213
      %p216 = scmp.ne.s32.totalorder %s201, %s215
      %p217 = scmp.eq.s32.totalorder %s41, 0
      %p218 = por %p216, %p217
      %s220 = sadd.s32 %s219, 1
      %p223 = scmp.eq.s32.totalorder %s35, 1
      %p224 = scmp.ne.s32.totalorder %s219, %s221
      %p225 = scmp.eq.s32.totalorder %s35, 0
      %p226 = por %p224, %p225
      %p227 = scmp.ne.s32.totalorder %s219, %s221
      %p228 = scmp.eq.s32.totalorder %s40, 1
      %p229 = por %p227, %p228
      %p230 = scmp.ne.s32.totalorder %s221, %s222
      %p231 = scmp.eq.s32.totalorder %s40, 0
      %p232 = por %p230, %p231
      %p233 = scmp.ne.s32.totalorder %s221, %s222
      %p234 = scmp.eq.s32.totalorder %s41, 1
      %p235 = por %p233, %p234
      %p237 = scmp.ne.s32.totalorder %s222, %s236
      %p238 = scmp.eq.s32.totalorder %s41, 0
      %p239 = por %p237, %p238
      %s241 = sadd.s32 %s240, 1
      %p244 = scmp.eq.s32.totalorder %s35, 1
      %p245 = scmp.ne.s32.totalorder %s240, %s242
      %p246 = scmp.eq.s32.totalorder %s35, 0
      %p247 = por %p245, %p246
      %p248 = scmp.ne.s32.totalorder %s240, %s242
      %p249 = scmp.eq.s32.totalorder %s40, 1
      %p250 = por %p248, %p249
      %p251 = scmp.ne.s32.totalorder %s242, %s243
      %p252 = scmp.eq.s32.totalorder %s40, 0
      %p253 = por %p251, %p252
      %p254 = scmp.ne.s32.totalorder %s242, %s243
      %p255 = scmp.eq.s32.totalorder %s41, 1
      %p256 = por %p254, %p255
      %p258 = scmp.ne.s32.totalorder %s243, %s257
      %p259 = scmp.eq.s32.totalorder %s41, 0
      %p260 = por %p258, %p259
      %s262 = sadd.s32 %s261, 1
      %p265 = scmp.eq.s32.totalorder %s35, 1
      %p266 = scmp.ne.s32.totalorder %s261, %s263
      %p267 = scmp.eq.s32.totalorder %s35, 0
      %p268 = por %p266, %p267
      %p269 = scmp.ne.s32.totalorder %s261, %s263
      %p270 = scmp.eq.s32.totalorder %s40, 1
      %p271 = por %p269, %p270
      %p272 = scmp.ne.s32.totalorder %s263, %s264
      %p273 = scmp.eq.s32.totalorder %s40, 0
      %p274 = por %p272, %p273
      %p275 = scmp.ne.s32.totalorder %s263, %s264
      %p276 = scmp.eq.s32.totalorder %s41, 1
      %p277 = por %p275, %p276
      %p279 = scmp.ne.s32.totalorder %s264, %s278
      %p280 = scmp.eq.s32.totalorder %s41, 0
      %p281 = por %p279, %p280
      %s283 = sadd.s32 %s282, 1
      %p286 = scmp.eq.s32.totalorder %s35, 1
      %p287 = scmp.ne.s32.totalorder %s282, %s284
      %p288 = scmp.eq.s32.totalorder %s35, 0
      %p289 = por %p287, %p288
      %p290 = scmp.ne.s32.totalorder %s282, %s284
      %p291 = scmp.eq.s32.totalorder %s40, 1
      %p292 = por %p290, %p291
      %p293 = scmp.ne.s32.totalorder %s284, %s285
      %p294 = scmp.eq.s32.totalorder %s40, 0
      %p295 = por %p293, %p294
      %p296 = scmp.ne.s32.totalorder %s284, %s285
      %p297 = scmp.eq.s32.totalorder %s41, 1
      %p298 = por %p296, %p297
      %p300 = scmp.ne.s32.totalorder %s285, %s299
      %p301 = scmp.eq.s32.totalorder %s41, 0
      %p302 = por %p300, %p301
      %s304 = sadd.s32 %s303, 1
      %p307 = scmp.eq.s32.totalorder %s35, 1
      %p308 = scmp.ne.s32.totalorder %s303, %s305
      %p309 = scmp.eq.s32.totalorder %s35, 0
      %p310 = por %p308, %p309
      %p311 = scmp.ne.s32.totalorder %s303, %s305
      %p312 = scmp.eq.s32.totalorder %s40, 1
      %p313 = por %p311, %p312
      %p314 = scmp.ne.s32.totalorder %s305, %s306
      %p315 = scmp.eq.s32.totalorder %s40, 0
      %p316 = por %p314, %p315
      %p317 = scmp.ne.s32.totalorder %s305, %s306
      %p318 = scmp.eq.s32.totalorder %s41, 1
      %p319 = por %p317, %p318
      %p321 = scmp.ne.s32.totalorder %s306, %s320
      %p322 = scmp.eq.s32.totalorder %s41, 0
      %p323 = por %p321, %p322
      %s325 = sadd.s32 %s324, 1
      %p328 = scmp.eq.s32.totalorder %s35, 1
      %p329 = scmp.ne.s32.totalorder %s324, %s326
      %p330 = scmp.eq.s32.totalorder %s35, 0
      %p331 = por %p329, %p330
      %p332 = scmp.ne.s32.totalorder %s324, %s326
      %p333 = scmp.eq.s32.totalorder %s40, 1
      %p334 = por %p332, %p333
      %p335 = scmp.ne.s32.totalorder %s326, %s327
      %p336 = scmp.eq.s32.totalorder %s40, 0
      %p337 = por %p335, %p336
      %p338 = scmp.ne.s32.totalorder %s326, %s327
      %p339 = scmp.eq.s32.totalorder %s41, 1
      %p340 = por %p338, %p339
      %p342 = scmp.ne.s32.totalorder %s327, %s341
      %p343 = scmp.eq.s32.totalorder %s41, 0
      %p344 = por %p342, %p343
      %s346 = sadd.s32 %s345, 1
      %p349 = scmp.eq.s32.totalorder %s35, 1
      %p350 = scmp.ne.s32.totalorder %s345, %s347
      %p351 = scmp.eq.s32.totalorder %s35, 0
      %p352 = por %p350, %p351
      %p353 = scmp.ne.s32.totalorder %s345, %s347
      %p354 = scmp.eq.s32.totalorder %s40, 1
      %p355 = por %p353, %p354
      %p356 = scmp.ne.s32.totalorder %s347, %s348
      %p357 = scmp.eq.s32.totalorder %s40, 0
      %p358 = por %p356, %p357
      %p359 = scmp.ne.s32.totalorder %s347, %s348
      %p360 = scmp.eq.s32.totalorder %s41, 1
      %p361 = por %p359, %p360
      %p363 = scmp.ne.s32.totalorder %s348, %s362
      %p364 = scmp.eq.s32.totalorder %s41, 0
      %p365 = por %p363, %p364
      %s367 = sadd.s32 %s366, 1
      %p370 = scmp.eq.s32.totalorder %s35, 1
      %p371 = scmp.ne.s32.totalorder %s366, %s368
      %p372 = scmp.eq.s32.totalorder %s35, 0
      %p373 = por %p371, %p372
      %p374 = scmp.ne.s32.totalorder %s366, %s368
      %p375 = scmp.eq.s32.totalorder %s40, 1
      %p376 = por %p374, %p375
      %p377 = scmp.ne.s32.totalorder %s368, %s369
      %p378 = scmp.eq.s32.totalorder %s40, 0
      %p379 = por %p377, %p378
      %p380 = scmp.ne.s32.totalorder %s368, %s369
      %p381 = scmp.eq.s32.totalorder %s41, 1
      %p382 = por %p380, %p381
      %p384 = scmp.ne.s32.totalorder %s369, %s383
      %p385 = scmp.eq.s32.totalorder %s41, 0
      %p386 = por %p384, %p385
      %s388 = sadd.s32 %s387, 1
      %p391 = scmp.eq.s32.totalorder %s35, 1
      %p392 = scmp.ne.s32.totalorder %s387, %s389
      %p393 = scmp.eq.s32.totalorder %s35, 0
      %p394 = por %p392, %p393
      %p395 = scmp.ne.s32.totalorder %s387, %s389
      %p396 = scmp.eq.s32.totalorder %s40, 1
      %p397 = por %p395, %p396
      %p398 = scmp.ne.s32.totalorder %s389, %s390
      %p399 = scmp.eq.s32.totalorder %s40, 0
      %p400 = por %p398, %p399
      %p401 = scmp.ne.s32.totalorder %s389, %s390
      %p402 = scmp.eq.s32.totalorder %s41, 1
      %p403 = por %p401, %p402
      %p405 = scmp.ne.s32.totalorder %s390, %s404
      %p406 = scmp.eq.s32.totalorder %s41, 0
      %p407 = por %p405, %p406
      %s409 = sadd.s32 %s408, 1
      %p412 = scmp.eq.s32.totalorder %s35, 1
      %p413 = scmp.ne.s32.totalorder %s408, %s410
      %p414 = scmp.eq.s32.totalorder %s35, 0
      %p415 = por %p413, %p414
      %p416 = scmp.ne.s32.totalorder %s408, %s410
      %p417 = scmp.eq.s32.totalorder %s40, 1
      %p418 = por %p416, %p417
      %p419 = scmp.ne.s32.totalorder %s410, %s411
      %p420 = scmp.eq.s32.totalorder %s40, 0
      %p421 = por %p419, %p420
      %p422 = scmp.ne.s32.totalorder %s410, %s411
      %p423 = scmp.eq.s32.totalorder %s41, 1
      %p424 = por %p422, %p423
      %p426 = scmp.ne.s32.totalorder %s411, %s425
      %p427 = scmp.eq.s32.totalorder %s41, 0
      %p428 = por %p426, %p427
      %s429 = ssub.s32 %s42, %s54
      %s430 = ssub.s32 %s43, %s50
      %s431 = sor.u32 %s429, %s430
      %p432 = scmp.eq.s32.totalorder %s431, 0
      %s434 = sadd.s32 %s433, 1
      %s435 = scalar_select %p432, %s433, %s434
      %p438 = pneg %p432
      %p439 = scmp.eq.s32.totalorder %s35, 1
      %p440 = por %p438, %p439
      %p441 = scmp.ne.s32.totalorder %s433, %s436
      %p442 = scmp.eq.s32.totalorder %s35, 0
      %p443 = por %p441, %p442
      %p444 = scmp.ne.s32.totalorder %s433, %s436
      %p445 = scmp.eq.s32.totalorder %s40, 1
      %p446 = por %p444, %p445
      %p447 = scmp.ne.s32.totalorder %s436, %s437
      %p448 = scmp.eq.s32.totalorder %s40, 0
      %p449 = por %p447, %p448
      %p450 = scmp.ne.s32.totalorder %s436, %s437
      %p451 = scmp.eq.s32.totalorder %s41, 1
      %p452 = por %p450, %p451
      %p454 = scmp.ne.s32.totalorder %s437, %s453
      %p455 = scmp.eq.s32.totalorder %s41, 0
      %p456 = por %p454, %p455
      %s457 = ssub.s32 %s42, %s54
      %s458 = ssub.s32 %s43, %s50
      %s459 = sor.u32 %s457, %s458
      %p460 = scmp.eq.s32.totalorder %s459, 0
      %s462 = sadd.s32 %s461, 1
      %s463 = scalar_select %p460, %s461, %s462
      %p466 = pneg %p460
      %p467 = scmp.eq.s32.totalorder %s35, 1
      %p468 = por %p466, %p467
      %p469 = scmp.ne.s32.totalorder %s461, %s464
      %p470 = scmp.eq.s32.totalorder %s35, 0
      %p471 = por %p469, %p470
      %p472 = scmp.ne.s32.totalorder %s461, %s464
      %p473 = scmp.eq.s32.totalorder %s40, 1
      %p474 = por %p472, %p473
      %p475 = scmp.ne.s32.totalorder %s464, %s465
      %p476 = scmp.eq.s32.totalorder %s40, 0
      %p477 = por %p475, %p476
      %p478 = scmp.ne.s32.totalorder %s464, %s465
      %p479 = scmp.eq.s32.totalorder %s41, 1
      %p480 = por %p478, %p479
      %p482 = scmp.ne.s32.totalorder %s465, %s481
      %p483 = scmp.eq.s32.totalorder %s41, 0
      %p484 = por %p482, %p483
      %p485 = scmp.le.s32.totalorder 1, %s35
      %p486 = scmp.lt.s32.totalorder %s35, 3
      %p487 = pnand %p485, %p486
      %p488 = pneg %p487
      // Predicated region
      $region9: #{tpu_custom_call.1} parent=5 // pred_check
        _
      $region10: #{tpu_custom_call.1} parent=5 // pred_check_branch
        %490 = sbr.rel (%p487) target = $region12
      $region11: #{tpu_custom_call.1} parent=5 // pred_region
        %s491 = ssub.s32 %s35, 1
        // Predicated region
        $region13: #{tpu_custom_call.1} parent=11 // pred_check
          %p492 = pneg %p148
        $region14: #{tpu_custom_call.1} parent=11 // pred_check_branch
          %494 = sbr.rel (%p492) target = $region16
        $region15: #{tpu_custom_call.1} parent=11 // pred_region
          _
        $region16: #{tpu_custom_call.1} parent=11 // pred_fallthru
          _
        // Predicated region
        $region17: #{tpu_custom_call.1} parent=11 // pred_check
          %p495 = pneg %p169
        $region18: #{tpu_custom_call.1} parent=11 // pred_check_branch
          %497 = sbr.rel (%p495) target = $region20
        $region19: #{tpu_custom_call.1} parent=11 // pred_region
          %s499 = ssub.s32 16, 16
          %500 = vsyncadd [#allocation3], %s499
          %s502 = sshll.u32 [#allocation2], 4
          %s503 = int_to_ptr.vmem [resolvable:$true] %s502
          %505 = dma.hbm_to_vmem [thread:$0]  %s4, 16, %s503, [#allocation3]
        $region20: #{tpu_custom_call.1} parent=11 // pred_fallthru
          _
        // Predicated region
        $region21: #{tpu_custom_call.1} parent=11 // pred_check
          %p506 = pneg %p190
        $region22: #{tpu_custom_call.1} parent=11 // pred_check_branch
          %508 = sbr.rel (%p506) target = $region24
        $region23: #{tpu_custom_call.1} parent=11 // pred_region
          %s510 = ssub.s32 256, 256
          %511 = vsyncadd [#allocation6], %s510
          %s512 = sshll.u32 [#allocation5], 4
          %s513 = int_to_ptr.vmem [resolvable:$true] %s512
          %518 = dma.hbm_to_vmem [thread:$0]  %s5, 256, %s513, [#allocation6], 64, 64, 4
        $region24: #{tpu_custom_call.1} parent=11 // pred_fallthru
          _
        // Predicated region
        $region25: #{tpu_custom_call.1} parent=11 // pred_check
          %p519 = pneg %p211
        $region26: #{tpu_custom_call.1} parent=11 // pred_check_branch
          %521 = sbr.rel (%p519) target = $region28
        $region27: #{tpu_custom_call.1} parent=11 // pred_region
          %s523 = ssub.s32 16, 16
          %524 = vsyncadd [#allocation6], %s523
          %s526 = sshll.u32 [#allocation7], 4
          %s527 = int_to_ptr.vmem [resolvable:$true] %s526
          %529 = dma.hbm_to_vmem [thread:$0]  %s6, 16, %s527, [#allocation6]
        $region28: #{tpu_custom_call.1} parent=11 // pred_fallthru
          _
        // Predicated region
        $region29: #{tpu_custom_call.1} parent=11 // pred_check
          %p530 = pneg %p232
        $region30: #{tpu_custom_call.1} parent=11 // pred_check_branch
          %532 = sbr.rel (%p530) target = $region32
        $region31: #{tpu_custom_call.1} parent=11 // pred_region
          %s534 = ssub.s32 256, 256
          %535 = vsyncadd [#allocation9], %s534
          %s536 = sshll.u32 [#allocation8], 4
          %s537 = int_to_ptr.vmem [resolvable:$true] %s536
          %542 = dma.hbm_to_vmem [thread:$0]  %s7, 256, %s537, [#allocation9], 64, 64, 4
        $region32: #{tpu_custom_call.1} parent=11 // pred_fallthru
          _
        // Predicated region
        $region33: #{tpu_custom_call.1} parent=11 // pred_check
          %p543 = pneg %p253
        $region34: #{tpu_custom_call.1} parent=11 // pred_check_branch
          %545 = sbr.rel (%p543) target = $region36
        $region35: #{tpu_custom_call.1} parent=11 // pred_region
          %s547 = ssub.s32 16, 16
          %548 = vsyncadd [#allocation9], %s547
          %s550 = sshll.u32 [#allocation10], 4
          %s551 = int_to_ptr.vmem [resolvable:$true] %s550
          %553 = dma.hbm_to_vmem [thread:$0]  %s8, 16, %s551, [#allocation9]
        $region36: #{tpu_custom_call.1} parent=11 // pred_fallthru
          _
        // Predicated region
        $region37: #{tpu_custom_call.1} parent=11 // pred_check
          %p554 = pneg %p274
        $region38: #{tpu_custom_call.1} parent=11 // pred_check_branch
          %556 = sbr.rel (%p554) target = $region40
        $region39: #{tpu_custom_call.1} parent=11 // pred_region
          %s558 = ssub.s32 16, 16
          %559 = vsyncadd [#allocation12], %s558
          %s561 = sshll.u32 [#allocation11], 4
          %s562 = int_to_ptr.vmem [resolvable:$true] %s561
          %564 = dma.hbm_to_vmem [thread:$0]  %s9, 16, %s562, [#allocation12]
        $region40: #{tpu_custom_call.1} parent=11 // pred_fallthru
          _
        // Predicated region
        $region41: #{tpu_custom_call.1} parent=11 // pred_check
          %p565 = pneg %p295
        $region42: #{tpu_custom_call.1} parent=11 // pred_check_branch
          %567 = sbr.rel (%p565) target = $region44
        $region43: #{tpu_custom_call.1} parent=11 // pred_region
          _
        $region44: #{tpu_custom_call.1} parent=11 // pred_fallthru
          _
        // Predicated region
        $region45: #{tpu_custom_call.1} parent=11 // pred_check
          %p568 = pneg %p316
        $region46: #{tpu_custom_call.1} parent=11 // pred_check_branch
          %570 = sbr.rel (%p568) target = $region48
        $region47: #{tpu_custom_call.1} parent=11 // pred_region
          _
        $region48: #{tpu_custom_call.1} parent=11 // pred_fallthru
          _
        // Predicated region
        $region49: #{tpu_custom_call.1} parent=11 // pred_check
          %p571 = pneg %p337
        $region50: #{tpu_custom_call.1} parent=11 // pred_check_branch
          %573 = sbr.rel (%p571) target = $region52
        $region51: #{tpu_custom_call.1} parent=11 // pred_region
          _
        $region52: #{tpu_custom_call.1} parent=11 // pred_fallthru
          _
        // Predicated region
        $region53: #{tpu_custom_call.1} parent=11 // pred_check
          %p574 = pneg %p358
        $region54: #{tpu_custom_call.1} parent=11 // pred_check_branch
          %576 = sbr.rel (%p574) target = $region56
        $region55: #{tpu_custom_call.1} parent=11 // pred_region
          _
        $region56: #{tpu_custom_call.1} parent=11 // pred_fallthru
          _
        // Predicated region
        $region57: #{tpu_custom_call.1} parent=11 // pred_check
          %p577 = pneg %p379
        $region58: #{tpu_custom_call.1} parent=11 // pred_check_branch
          %579 = sbr.rel (%p577) target = $region60
        $region59: #{tpu_custom_call.1} parent=11 // pred_region
          _
        $region60: #{tpu_custom_call.1} parent=11 // pred_fallthru
          _
        // Predicated region
        $region61: #{tpu_custom_call.1} parent=11 // pred_check
          %p580 = pneg %p400
        $region62: #{tpu_custom_call.1} parent=11 // pred_check_branch
          %582 = sbr.rel (%p580) target = $region64
        $region63: #{tpu_custom_call.1} parent=11 // pred_region
          _
        $region64: #{tpu_custom_call.1} parent=11 // pred_fallthru
          _
        // Predicated region
        $region65: #{tpu_custom_call.1} parent=11 // pred_check
          %p583 = pneg %p421
        $region66: #{tpu_custom_call.1} parent=11 // pred_check_branch
          %585 = sbr.rel (%p583) target = $region68
        $region67: #{tpu_custom_call.1} parent=11 // pred_region
          _
        $region68: #{tpu_custom_call.1} parent=11 // pred_fallthru
          _
      $region12: #{tpu_custom_call.1} parent=5 // pred_fallthru
        _
      %p586 = scmp.lt.s32.totalorder %s35, 2
      // Predicated region
      $region69: #{tpu_custom_call.1} parent=5 // pred_check
        %p587 = pneg %p586
      $region70: #{tpu_custom_call.1} parent=5 // pred_check_branch
        %589 = sbr.rel (%p587) target = $region72
      $region71: #{tpu_custom_call.1} parent=5 // pred_region
        // Predicated region
        $region73: #{tpu_custom_call.1} parent=71 // pred_check
          %p590 = pneg %p69
        $region74: #{tpu_custom_call.1} parent=71 // pred_check_branch
          %592 = sbr.rel (%p590) target = $region76
        $region75: #{tpu_custom_call.1} parent=71 // pred_region
          %p593 = scmp.lt.s32.totalorder %s42, 1
          %s594 = scalar_select %p593, %s42, 1
          %p595 = scmp.lt.s32.totalorder %s43, 0
          %s596 = scalar_select %p595, %s43, 0
          %s597 = sadd.s32 %s596, %s594
          %s598 = smul.addr %s597, 8
          %s599 = scalar_lea.vmem %s0, %s598
        $region76: #{tpu_custom_call.1} parent=71 // pred_fallthru
          _
        // Predicated region
        $region77: #{tpu_custom_call.1} parent=71 // pred_check
          %p600 = pneg %p95
        $region78: #{tpu_custom_call.1} parent=71 // pred_check_branch
          %602 = sbr.rel (%p600) target = $region80
        $region79: #{tpu_custom_call.1} parent=71 // pred_region
          %p603 = scmp.lt.s32.totalorder %s42, 1
          %s604 = scalar_select %p603, %s42, 1
          %s605 = smul.addr %s604, 8
          %s606 = scalar_lea.vmem %s1, %s605
        $region80: #{tpu_custom_call.1} parent=71 // pred_fallthru
          _
        // Predicated region
        $region81: #{tpu_custom_call.1} parent=71 // pred_check
          %p607 = pneg %p121
        $region82: #{tpu_custom_call.1} parent=71 // pred_check_branch
          %609 = sbr.rel (%p607) target = $region84
        $region83: #{tpu_custom_call.1} parent=71 // pred_region
          %p610 = scmp.lt.s32.totalorder %s42, 1
          %s611 = scalar_select %p610, %s42, 1
          %s612 = scalar_lea.vmem %s2, %s611
        $region84: #{tpu_custom_call.1} parent=71 // pred_fallthru
          _
      $region72: #{tpu_custom_call.1} parent=5 // pred_fallthru
        _
      %p613 = scmp.le.s32.totalorder 1, %s35
      %p614 = scmp.lt.s32.totalorder %s35, 3
      %p615 = pnand %p613, %p614
      %p616 = pneg %p615
      // Predicated region
      $region85: #{tpu_custom_call.1} parent=5 // pred_check
        _
      $region86: #{tpu_custom_call.1} parent=5 // pred_check_branch
        %618 = sbr.rel (%p615) target = $region88
      $region87: #{tpu_custom_call.1} parent=5 // pred_region
        %s619 = ssub.s32 %s35, 1
        // Predicated region
        $region89: #{tpu_custom_call.1} parent=87 // pred_check
          %p620 = pneg %p169
        $region90: #{tpu_custom_call.1} parent=87 // pred_check_branch
          %622 = sbr.rel (%p620) target = $region92
        $region91: #{tpu_custom_call.1} parent=87 // pred_region
          %623 = dma.done [#allocation3], 16
        $region92: #{tpu_custom_call.1} parent=87 // pred_fallthru
          _
        // Predicated region
        $region93: #{tpu_custom_call.1} parent=87 // pred_check
          %p624 = pneg %p190
        $region94: #{tpu_custom_call.1} parent=87 // pred_check_branch
          %626 = sbr.rel (%p624) target = $region96
        $region95: #{tpu_custom_call.1} parent=87 // pred_region
          %627 = dma.done [#allocation6], 256
        $region96: #{tpu_custom_call.1} parent=87 // pred_fallthru
          _
        // Predicated region
        $region97: #{tpu_custom_call.1} parent=87 // pred_check
          %p628 = pneg %p211
        $region98: #{tpu_custom_call.1} parent=87 // pred_check_branch
          %630 = sbr.rel (%p628) target = $region100
        $region99: #{tpu_custom_call.1} parent=87 // pred_region
          %631 = dma.done [#allocation6], 16
        $region100: #{tpu_custom_call.1} parent=87 // pred_fallthru
          _
        // Predicated region
        $region101: #{tpu_custom_call.1} parent=87 // pred_check
          %p632 = pneg %p232
        $region102: #{tpu_custom_call.1} parent=87 // pred_check_branch
          %634 = sbr.rel (%p632) target = $region104
        $region103: #{tpu_custom_call.1} parent=87 // pred_region
          %635 = dma.done [#allocation9], 256
        $region104: #{tpu_custom_call.1} parent=87 // pred_fallthru
          _
        // Predicated region
        $region105: #{tpu_custom_call.1} parent=87 // pred_check
          %p636 = pneg %p253
        $region106: #{tpu_custom_call.1} parent=87 // pred_check_branch
          %638 = sbr.rel (%p636) target = $region108
        $region107: #{tpu_custom_call.1} parent=87 // pred_region
          %639 = dma.done [#allocation9], 16
        $region108: #{tpu_custom_call.1} parent=87 // pred_fallthru
          _
        // Predicated region
        $region109: #{tpu_custom_call.1} parent=87 // pred_check
          %p640 = pneg %p274
        $region110: #{tpu_custom_call.1} parent=87 // pred_check_branch
          %642 = sbr.rel (%p640) target = $region112
        $region111: #{tpu_custom_call.1} parent=87 // pred_region
          %643 = dma.done [#allocation12], 16
        $region112: #{tpu_custom_call.1} parent=87 // pred_fallthru
          _
        %p644 = scmp.lt.s32.totalorder %s44, 1
        %s645 = scalar_select %p644, %s44, 1
        %p646 = scmp.lt.s32.totalorder %s45, 0
        %s647 = scalar_select %p646, %s45, 0
        %s648 = sadd.s32 %s647, %s645
        %s649 = smul.addr %s648, 8
        %s650 = scalar_lea.vmem %s0, %s649
        %p651 = pneg %p75
        %p652 = pneg %p72
        %p653 = scmp.lt.s32.totalorder %s44, 1
        %s654 = scalar_select %p653, %s44, 1
        %s655 = smul.addr %s654, 8
        %s656 = scalar_lea.vmem %s1, %s655
        %p657 = pneg %p101
        %p658 = pneg %p98
        %p659 = scmp.lt.s32.totalorder %s44, 1
        %s660 = scalar_select %p659, %s44, 1
        %s661 = scalar_lea.vmem %s2, %s660
        %p662 = pneg %p127
        %p663 = pneg %p124
        %p664 = pneg %p148
        %p665 = pneg %p145
        %p666 = pneg %p169
        %p667 = pneg %p166
        %p668 = pneg %p190
        %p669 = pneg %p187
        %p670 = pneg %p211
        %p671 = pneg %p208
        %p672 = pneg %p232
        %p673 = pneg %p229
        %p674 = pneg %p253
        %p675 = pneg %p250
        %p676 = pneg %p274
        %p677 = pneg %p271
        %p678 = pneg %p295
        %p679 = pneg %p292
        %p680 = pneg %p316
        %p681 = pneg %p313
        %p682 = pneg %p337
        %p683 = pneg %p334
        %p684 = pneg %p358
        %p685 = pneg %p355
        %p686 = pneg %p379
        %p687 = pneg %p376
        %p688 = pneg %p400
        %p689 = pneg %p397
        %p690 = pneg %p421
        %p691 = pneg %p418
        %p692 = pneg %p449
        %p693 = pneg %p446
        %s694 = sand.u32 %s436, 1
        %s695 = scalar_lea.sflag [#allocation4], %s694
        %s696 = sand.u32 %s436, 1
        %s697 = smul.addr %s696, 8
        %s698 = scalar_lea.vmem [#allocation13], %s697
        %p699 = pneg %p477
        %p700 = pneg %p474
        %s701 = sand.u32 %s464, 1
        %s702 = scalar_lea.sflag [#allocation15], %s701
        %s703 = sand.u32 %s464, 1
        %s704 = smul.addr %s703, 32
        %s705 = scalar_lea.vmem [#allocation14], %s704
        %p706 = scmp.lt.s32.totalorder %s44, 1
        %s707 = scalar_select %p706, %s44, 1
        %p708 = scmp.lt.s32.totalorder %s45, 0
        %s709 = scalar_select %p708, %s45, 0
        %s710 = sadd.s32 %s709, %s707
        %s711 = smul.addr %s710, 8
        %s712 = scalar_lea.vmem %s0, %s711
        %p713 = scmp.lt.s32.totalorder %s44, 1
        %s714 = scalar_select %p713, %s44, 1
        %s715 = smul.addr %s714, 8
        %s716 = scalar_lea.vmem %s1, %s715
        %p717 = scmp.lt.s32.totalorder %s44, 1
        %s718 = scalar_select %p717, %s44, 1
        %s719 = scalar_lea.vmem %s2, %s718
        %v721 = vld [vmem:[%s712] sm:$0xff]
        %v722 = vpack.c.bf16 %v721, %v721
        %v723 = vld [vmem:[%s716] sm:$0xff]
        %v724 = vpack.c.bf16 %v723, %v723
        %v725 = vld [vmem:[%s3] sm:$0xf]
        %v726 = vld [vmem:[%s3 + $0x4] sm:$0xf]
        %v727 = vld [vmem:[%s3 + $0x8] sm:$0xf]
        %v728 = vld [vmem:[%s3 + $0xc] sm:$0xf]
        %v729 = vld [vmem:[#allocation2] sm:$0x1]
        %v731 = vlaneseq
        %v732 = vshrl.u32 %v731, 7
        %v733 = vsub.s32 0, %v732
        %v734 = vrot.slane %v729, %v733
        %v740 = vunpack.c.l.b16 %v725
        %v741 = vunpack.c.l.b16 %v726
        %v742 = vunpack.c.l.b16 %v727
        %v743 = vunpack.c.l.b16 %v728
        %v744 = vpack.c.b16 %v741, %v740
        %v745 = vpack.c.b16 %v743, %v742
        %vm748 = vcmask 261120
        %v750 = vsel %vm748, %v722, 0
        %752 = vmatprep.subr.bf16.mxu0 0
        %753 = vmatpush1.bf16.msra.mxu0 %v744
        %754 = vmatprep.subr.bf16.mxu0 0
        %755 = vmatpush1.bf16.msra.mxu0 %v745
        %756 = vmatprep.subr.bf16.mxu0 0
        %757 = vmatpush1.bf16.msra.mxu0 0
        %758 = vmatprep.subr.bf16.mxu0 0
        %759 = vmatpush1.bf16.msra.mxu0 0
        %760 = vmatprep.subr.bf16.mxu0 0
        %761 = vmatpush1.bf16.msra.mxu0 0
        %762 = vmatprep.subr.bf16.mxu0 0
        %763 = vmatpush1.bf16.msra.mxu0 0
        %764 = vmatprep.subr.bf16.mxu0 0
        %765 = vmatpush1.bf16.msra.mxu0 0
        %766 = vmatprep.subr.bf16.mxu0 0
        %767 = vmatpush1.bf16.msra.mxu0 0
        %768 = vmatprep.subr.bf16.mxu0 0
        %769 = vmatpush1.bf16.msra.mxu0 0
        %770 = vmatprep.subr.bf16.mxu0 0
        %771 = vmatpush1.bf16.msra.mxu0 0
        %772 = vmatprep.subr.bf16.mxu0 0
        %773 = vmatpush1.bf16.msra.mxu0 0
        %774 = vmatprep.subr.bf16.mxu0 0
        %775 = vmatpush1.bf16.msra.mxu0 0
        %776 = vmatprep.subr.bf16.mxu0 0
        %777 = vmatpush1.bf16.msra.mxu0 0
        %778 = vmatprep.subr.bf16.mxu0 0
        %779 = vmatpush1.bf16.msra.mxu0 0
        %780 = vmatprep.subr.bf16.mxu0 0
        %781 = vmatpush1.bf16.msra.mxu0 0
        %782 = vmatprep.subr.bf16.mxu0 0
        %783 = vmatpush1.bf16.msra.mxu0 0
        %784 = vmatprep.mubr.bf16.mxu0 0
        %785 = vmatmul.mubr.bf16.gmra.mrb[0].mxu0 %v750
        %v786 = vpop.f32.mrb[0].mxu0
        %v787 = vadd.f32 %v734, %v786
        %v788 = vpop.f32.mrb[0].mxu0
        %v789 = vpop.f32.mrb[0].mxu0
        %v790 = vpop.f32.mrb[0].mxu0
        %791 = vdwg.mxu0
        %v792 = vld [vmem:[#allocation5] sm:$0xf]
        %v793 = vld [vmem:[#allocation5 + $0x4] sm:$0xf]
        %v794 = vld [vmem:[#allocation5 + $0x8] sm:$0xf]
        %v795 = vld [vmem:[#allocation5 + $0xc] sm:$0xf]
        %v796 = vld [vmem:[#allocation7] sm:$0x1]
        %v798 = vlaneseq
        %v799 = vshrl.u32 %v798, 7
        %v800 = vsub.s32 0, %v799
        %v801 = vrot.slane %v796, %v800
        %v807 = vunpack.c.l.b16 %v792
        %v808 = vunpack.c.l.b16 %v793
        %v809 = vunpack.c.l.b16 %v794
        %v810 = vunpack.c.l.b16 %v795
        %v811 = vpack.c.b16 %v808, %v807
        %v812 = vpack.c.b16 %v810, %v809
        %v816 = vsel %vm748, %v724, 0
        %818 = vmatprep.subr.bf16.mxu0 0
        %819 = vmatpush1.bf16.msra.mxu0 %v811
        %820 = vmatprep.subr.bf16.mxu0 0
        %821 = vmatpush1.bf16.msra.mxu0 %v812
        %822 = vmatprep.subr.bf16.mxu0 0
        %823 = vmatpush1.bf16.msra.mxu0 0
        %824 = vmatprep.subr.bf16.mxu0 0
        %825 = vmatpush1.bf16.msra.mxu0 0
        %826 = vmatprep.subr.bf16.mxu0 0
        %827 = vmatpush1.bf16.msra.mxu0 0
        %828 = vmatprep.subr.bf16.mxu0 0
        %829 = vmatpush1.bf16.msra.mxu0 0
        %830 = vmatprep.subr.bf16.mxu0 0
        %831 = vmatpush1.bf16.msra.mxu0 0
        %832 = vmatprep.subr.bf16.mxu0 0
        %833 = vmatpush1.bf16.msra.mxu0 0
        %834 = vmatprep.subr.bf16.mxu0 0
        %835 = vmatpush1.bf16.msra.mxu0 0
        %836 = vmatprep.subr.bf16.mxu0 0
        %837 = vmatpush1.bf16.msra.mxu0 0
        %838 = vmatprep.subr.bf16.mxu0 0
        %839 = vmatpush1.bf16.msra.mxu0 0
        %840 = vmatprep.subr.bf16.mxu0 0
        %841 = vmatpush1.bf16.msra.mxu0 0
        %842 = vmatprep.subr.bf16.mxu0 0
        %843 = vmatpush1.bf16.msra.mxu0 0
        %844 = vmatprep.subr.bf16.mxu0 0
        %845 = vmatpush1.bf16.msra.mxu0 0
        %846 = vmatprep.subr.bf16.mxu0 0
        %847 = vmatpush1.bf16.msra.mxu0 0
        %848 = vmatprep.subr.bf16.mxu0 0
        %849 = vmatpush1.bf16.msra.mxu0 0
        %850 = vmatprep.mubr.bf16.mxu0 0
        %851 = vmatmul.mubr.bf16.gmra.mrb[0].mxu0 %v816
        %v852 = vpop.f32.mrb[0].mxu0
        %v853 = vadd.f32 %v801, %v852
        %v854 = vpop.f32.mrb[0].mxu0
        %v855 = vpop.f32.mrb[0].mxu0
        %v856 = vpop.f32.mrb[0].mxu0
        %857 = vdwg.mxu0
        %859 = vrot.lane.b32.xlu0 %v787, 120
        %v860 = vpop.permute.xlu0 %859
        %862 = vrot.lane.b32.xlu0 %v787, 112
        %v863 = vpop.permute.xlu0 %862
        %865 = vrot.lane.b32.xlu0 %v787, 104
        %v866 = vpop.permute.xlu0 %865
        %869 = vrot.lane.b32.xlu0 %v853, 120
        %v870 = vpop.permute.xlu0 %869
        %872 = vrot.lane.b32.xlu0 %v853, 112
        %v873 = vpop.permute.xlu0 %872
        %875 = vrot.lane.b32.xlu0 %v853, 104
        %v876 = vpop.permute.xlu0 %875
        %v878 = vpack.c.bf16 %v787, %v787
        %v879 = vpack.c.bf16 %v860, %v860
        %v880 = vpack.c.bf16 %v863, %v863
        %v881 = vpack.c.bf16 %v866, %v866
        %v882 = vpack.c.bf16 %v853, %v853
        %v883 = vpack.c.bf16 %v870, %v870
        %v884 = vpack.c.bf16 %v873, %v873
        %v885 = vpack.c.bf16 %v876, %v876
        %v886 = vld [vmem:[%s719] sm:$0x1]
        %v887 = vsub.f32 %v886, 1.0
        %v888 = vmul.f32 %v887, 1e+09
        %v890 = vlaneseq
        %v891 = vshrl.u32 %v890, 7
        %v892 = vsub.s32 0, %v891
        %v893 = vrot.slane %v888, %v892
        %vm895 = vcmask 64512
        %v897 = vsel %vm895, %v878, 0
        %v900 = vsel %vm895, %v882, 0
        %902 = vmatprep.subr.bf16.mxu0 0
        %903 = vmatpush1.bf16.xpose.msra.mxu0 %v900
        %904 = vmatprep.subr.bf16.mxu0 0
        %905 = vmatpush1.bf16.xpose.msra.mxu0 0
        %906 = vmatprep.subr.bf16.mxu0 0
        %907 = vmatpush1.bf16.xpose.msra.mxu0 0
        %908 = vmatprep.subr.bf16.mxu0 0
        %909 = vmatpush1.bf16.xpose.msra.mxu0 0
        %910 = vmatprep.subr.bf16.mxu0 0
        %911 = vmatpush1.bf16.xpose.msra.mxu0 0
        %912 = vmatprep.subr.bf16.mxu0 0
        %913 = vmatpush1.bf16.xpose.msra.mxu0 0
        %914 = vmatprep.subr.bf16.mxu0 0
        %915 = vmatpush1.bf16.xpose.msra.mxu0 0
        %916 = vmatprep.subr.bf16.mxu0 0
        %917 = vmatpush1.bf16.xpose.msra.mxu0 0
        %918 = vmatprep.subr.bf16.mxu0 0
        %919 = vmatpush1.bf16.xpose.msra.mxu0 0
        %920 = vmatprep.subr.bf16.mxu0 0
        %921 = vmatpush1.bf16.xpose.msra.mxu0 0
        %922 = vmatprep.subr.bf16.mxu0 0
        %923 = vmatpush1.bf16.xpose.msra.mxu0 0
        %924 = vmatprep.subr.bf16.mxu0 0
        %925 = vmatpush1.bf16.xpose.msra.mxu0 0
        %926 = vmatprep.subr.bf16.mxu0 0
        %927 = vmatpush1.bf16.xpose.msra.mxu0 0
        %928 = vmatprep.subr.bf16.mxu0 0
        %929 = vmatpush1.bf16.xpose.msra.mxu0 0
        %930 = vmatprep.subr.bf16.mxu0 0
        %931 = vmatpush1.bf16.xpose.msra.mxu0 0
        %932 = vmatprep.subr.bf16.mxu0 0
        %933 = vmatpush1.bf16.xpose.msra.mxu0 0
        %934 = vmatprep.mubr.bf16.mxu0 0
        %935 = vmatmul.mubr.bf16.gmra.mrb[0].mxu0 %v897
        %v936 = vpop.f32.mrb[0].mxu0
        %v937 = vadd.f32 %v893, %v936
        %v938 = vpop.f32.mrb[0].mxu0
        %v939 = vpop.f32.mrb[0].mxu0
        %v940 = vpop.f32.mrb[0].mxu0
        %941 = vdwg.mxu0
        %v943 = vsel %vm895, %v879, 0
        %v946 = vsel %vm895, %v883, 0
        %948 = vmatprep.subr.bf16.mxu0 0
        %949 = vmatpush1.bf16.xpose.msra.mxu0 %v946
        %950 = vmatprep.subr.bf16.mxu0 0
        %951 = vmatpush1.bf16.xpose.msra.mxu0 0
        %952 = vmatprep.subr.bf16.mxu0 0
        %953 = vmatpush1.bf16.xpose.msra.mxu0 0
        %954 = vmatprep.subr.bf16.mxu0 0
        %955 = vmatpush1.bf16.xpose.msra.mxu0 0
        %956 = vmatprep.subr.bf16.mxu0 0
        %957 = vmatpush1.bf16.xpose.msra.mxu0 0
        %958 = vmatprep.subr.bf16.mxu0 0
        %959 = vmatpush1.bf16.xpose.msra.mxu0 0
        %960 = vmatprep.subr.bf16.mxu0 0
        %961 = vmatpush1.bf16.xpose.msra.mxu0 0
        %962 = vmatprep.subr.bf16.mxu0 0
        %963 = vmatpush1.bf16.xpose.msra.mxu0 0
        %964 = vmatprep.subr.bf16.mxu0 0
        %965 = vmatpush1.bf16.xpose.msra.mxu0 0
        %966 = vmatprep.subr.bf16.mxu0 0
        %967 = vmatpush1.bf16.xpose.msra.mxu0 0
        %968 = vmatprep.subr.bf16.mxu0 0
        %969 = vmatpush1.bf16.xpose.msra.mxu0 0
        %970 = vmatprep.subr.bf16.mxu0 0
        %971 = vmatpush1.bf16.xpose.msra.mxu0 0
        %972 = vmatprep.subr.bf16.mxu0 0
        %973 = vmatpush1.bf16.xpose.msra.mxu0 0
        %974 = vmatprep.subr.bf16.mxu0 0
        %975 = vmatpush1.bf16.xpose.msra.mxu0 0
        %976 = vmatprep.subr.bf16.mxu0 0
        %977 = vmatpush1.bf16.xpose.msra.mxu0 0
        %978 = vmatprep.subr.bf16.mxu0 0
        %979 = vmatpush1.bf16.xpose.msra.mxu0 0
        %980 = vmatprep.mubr.bf16.mxu0 0
        %981 = vmatmul.mubr.bf16.gmra.mrb[0].mxu0 %v943
        %v982 = vpop.f32.mrb[0].mxu0
        %v983 = vadd.f32 %v893, %v982
        %v984 = vpop.f32.mrb[0].mxu0
        %v985 = vpop.f32.mrb[0].mxu0
        %v986 = vpop.f32.mrb[0].mxu0
        %987 = vdwg.mxu0
        %v989 = vsel %vm895, %v880, 0
        %v992 = vsel %vm895, %v884, 0
        %994 = vmatprep.subr.bf16.mxu0 0
        %995 = vmatpush1.bf16.xpose.msra.mxu0 %v992
        %996 = vmatprep.subr.bf16.mxu0 0
        %997 = vmatpush1.bf16.xpose.msra.mxu0 0
        %998 = vmatprep.subr.bf16.mxu0 0
        %999 = vmatpush1.bf16.xpose.msra.mxu0 0
        %1000 = vmatprep.subr.bf16.mxu0 0
        %1001 = vmatpush1.bf16.xpose.msra.mxu0 0
        %1002 = vmatprep.subr.bf16.mxu0 0
        %1003 = vmatpush1.bf16.xpose.msra.mxu0 0
        %1004 = vmatprep.subr.bf16.mxu0 0
        %1005 = vmatpush1.bf16.xpose.msra.mxu0 0
        %1006 = vmatprep.subr.bf16.mxu0 0
        %1007 = vmatpush1.bf16.xpose.msra.mxu0 0
        %1008 = vmatprep.subr.bf16.mxu0 0
        %1009 = vmatpush1.bf16.xpose.msra.mxu0 0
        %1010 = vmatprep.subr.bf16.mxu0 0
        %1011 = vmatpush1.bf16.xpose.msra.mxu0 0
        %1012 = vmatprep.subr.bf16.mxu0 0
        %1013 = vmatpush1.bf16.xpose.msra.mxu0 0
        %1014 = vmatprep.subr.bf16.mxu0 0
        %1015 = vmatpush1.bf16.xpose.msra.mxu0 0
        %1016 = vmatprep.subr.bf16.mxu0 0
        %1017 = vmatpush1.bf16.xpose.msra.mxu0 0
        %1018 = vmatprep.subr.bf16.mxu0 0
        %1019 = vmatpush1.bf16.xpose.msra.mxu0 0
        %1020 = vmatprep.subr.bf16.mxu0 0
        %1021 = vmatpush1.bf16.xpose.msra.mxu0 0
        %1022 = vmatprep.subr.bf16.mxu0 0
        %1023 = vmatpush1.bf16.xpose.msra.mxu0 0
        %1024 = vmatprep.subr.bf16.mxu0 0
        %1025 = vmatpush1.bf16.xpose.msra.mxu0 0
        %1026 = vmatprep.mubr.bf16.mxu0 0
        %1027 = vmatmul.mubr.bf16.gmra.mrb[0].mxu0 %v989
        %v1028 = vpop.f32.mrb[0].mxu0
        %v1029 = vadd.f32 %v893, %v1028
        %v1030 = vpop.f32.mrb[0].mxu0
        %v1031 = vpop.f32.mrb[0].mxu0
        %v1032 = vpop.f32.mrb[0].mxu0
        %1033 = vdwg.mxu0
        %v1035 = vsel %vm895, %v881, 0
        %v1038 = vsel %vm895, %v885, 0
        %1040 = vmatprep.subr.bf16.mxu0 0
        %1041 = vmatpush1.bf16.xpose.msra.mxu0 %v1038
        %1042 = vmatprep.subr.bf16.mxu0 0
        %1043 = vmatpush1.bf16.xpose.msra.mxu0 0
        %1044 = vmatprep.subr.bf16.mxu0 0
        %1045 = vmatpush1.bf16.xpose.msra.mxu0 0
        %1046 = vmatprep.subr.bf16.mxu0 0
        %1047 = vmatpush1.bf16.xpose.msra.mxu0 0
        %1048 = vmatprep.subr.bf16.mxu0 0
        %1049 = vmatpush1.bf16.xpose.msra.mxu0 0
        %1050 = vmatprep.subr.bf16.mxu0 0
        %1051 = vmatpush1.bf16.xpose.msra.mxu0 0
        %1052 = vmatprep.subr.bf16.mxu0 0
        %1053 = vmatpush1.bf16.xpose.msra.mxu0 0
        %1054 = vmatprep.subr.bf16.mxu0 0
        %1055 = vmatpush1.bf16.xpose.msra.mxu0 0
        %1056 = vmatprep.subr.bf16.mxu0 0
        %1057 = vmatpush1.bf16.xpose.msra.mxu0 0
        %1058 = vmatprep.subr.bf16.mxu0 0
        %1059 = vmatpush1.bf16.xpose.msra.mxu0 0
        %1060 = vmatprep.subr.bf16.mxu0 0
        %1061 = vmatpush1.bf16.xpose.msra.mxu0 0
        %1062 = vmatprep.subr.bf16.mxu0 0
        %1063 = vmatpush1.bf16.xpose.msra.mxu0 0
        %1064 = vmatprep.subr.bf16.mxu0 0
        %1065 = vmatpush1.bf16.xpose.msra.mxu0 0
        %1066 = vmatprep.subr.bf16.mxu0 0
        %1067 = vmatpush1.bf16.xpose.msra.mxu0 0
        %1068 = vmatprep.subr.bf16.mxu0 0
        %1069 = vmatpush1.bf16.xpose.msra.mxu0 0
        %1070 = vmatprep.subr.bf16.mxu0 0
        %1071 = vmatpush1.bf16.xpose.msra.mxu0 0
        %1072 = vmatprep.mubr.bf16.mxu0 0
        %1073 = vmatmul.mubr.bf16.gmra.mrb[0].mxu0 %v1035
        %v1074 = vpop.f32.mrb[0].mxu0
        %v1075 = vadd.f32 %v893, %v1074
        %v1076 = vpop.f32.mrb[0].mxu0
        %v1077 = vpop.f32.mrb[0].mxu0
        %v1078 = vpop.f32.mrb[0].mxu0
        %1079 = vdwg.mxu0
        %v1080 = vsel %vm895, %v937, -inf
        %1081 = vmax.xlane.f32.xlu0 %v1080
        %v1082 = vpop.xlane.xlu0 %1081
        %v1083 = vsel %vm895, %v983, -inf
        %1084 = vmax.xlane.f32.xlu0 %v1083
        %v1085 = vpop.xlane.xlu0 %1084
        %v1086 = vsel %vm895, %v1029, -inf
        %1087 = vmax.xlane.f32.xlu0 %v1086
        %v1088 = vpop.xlane.xlu0 %1087
        %v1089 = vsel %vm895, %v1075, -inf
        %1090 = vmax.xlane.f32.xlu0 %v1089
        %v1091 = vpop.xlane.xlu0 %1090
        %v1092 = vsub.f32 %v937, %v1082
        %v1093 = vsub.f32 %v983, %v1085
        %v1094 = vsub.f32 %v1029, %v1088
        %v1095 = vsub.f32 %v1075, %v1091
        %v1096 = vmul.f32 %v1092, 1.442695
        %v1097 = vpow.pop %v1096
        %v1098 = vmul.f32 %v1093, 1.442695
        %v1099 = vpow.pop %v1098
        %v1100 = vmul.f32 %v1094, 1.442695
        %v1101 = vpow.pop %v1100
        %v1102 = vmul.f32 %v1095, 1.442695
        %v1103 = vpow.pop %v1102
        %v1104 = vsel %vm895, %v1097, 0.0
        %1105 = vadd.xlane.f32.xlu0 %v1104
        %v1106 = vpop.xlane.xlu0 %1105
        %v1107 = vsel %vm895, %v1099, 0.0
        %1108 = vadd.xlane.f32.xlu0 %v1107
        %v1109 = vpop.xlane.xlu0 %1108
        %v1110 = vsel %vm895, %v1101, 0.0
        %1111 = vadd.xlane.f32.xlu0 %v1110
        %v1112 = vpop.xlane.xlu0 %1111
        %v1113 = vsel %vm895, %v1103, 0.0
        %1114 = vadd.xlane.f32.xlu0 %v1113
        %v1115 = vpop.xlane.xlu0 %1114
        %v1116 = vrcp.pop %v1106
        %v1117 = vrcp.pop %v1109
        %v1118 = vrcp.pop %v1112
        %v1119 = vrcp.pop %v1115
        %v1120 = vmul.f32 %v1097, %v1116
        %v1121 = vmul.f32 %v1099, %v1117
        %v1122 = vmul.f32 %v1101, %v1118
        %v1123 = vmul.f32 %v1103, %v1119
        %1124 = vst.msk [vmem:[%s705] sm:$0xff] %vm895, %v1120
        %1125 = vst.msk [vmem:[%s705 + $0x8] sm:$0xff] %vm895, %v1121
        %1126 = vst.msk [vmem:[%s705 + $0x10] sm:$0xff] %vm895, %v1122
        %1127 = vst.msk [vmem:[%s705 + $0x18] sm:$0xff] %vm895, %v1123
        %v1128 = vpack.c.bf16 %v1120, %v1120
        %v1129 = vpack.c.bf16 %v1121, %v1121
        %v1130 = vpack.c.bf16 %v1122, %v1122
        %v1131 = vpack.c.bf16 %v1123, %v1123
        %1133 = vrot.lane.b32.xlu0 %v882, 96
        %v1134 = vpop.permute.xlu0 %1133
        %v1136 = vsel %vm895, %v1128, 0
        %vm1138 = vcmask 1043456
        %v1140 = vsel %vm1138, %v1134, 0
        %1142 = vmatprep.subr.bf16.mxu0 0
        %1143 = vmatpush1.bf16.msra.mxu0 %v1140
        %1144 = vmatprep.subr.bf16.mxu0 0
        %1145 = vmatpush1.bf16.msra.mxu0 0
        %1146 = vmatprep.subr.bf16.mxu0 0
        %1147 = vmatpush1.bf16.msra.mxu0 0
        %1148 = vmatprep.subr.bf16.mxu0 0
        %1149 = vmatpush1.bf16.msra.mxu0 0
        %1150 = vmatprep.subr.bf16.mxu0 0
        %1151 = vmatpush1.bf16.msra.mxu0 0
        %1152 = vmatprep.subr.bf16.mxu0 0
        %1153 = vmatpush1.bf16.msra.mxu0 0
        %1154 = vmatprep.subr.bf16.mxu0 0
        %1155 = vmatpush1.bf16.msra.mxu0 0
        %1156 = vmatprep.subr.bf16.mxu0 0
        %1157 = vmatpush1.bf16.msra.mxu0 0
        %1158 = vmatprep.subr.bf16.mxu0 0
        %1159 = vmatpush1.bf16.msra.mxu0 0
        %1160 = vmatprep.subr.bf16.mxu0 0
        %1161 = vmatpush1.bf16.msra.mxu0 0
        %1162 = vmatprep.subr.bf16.mxu0 0
        %1163 = vmatpush1.bf16.msra.mxu0 0
        %1164 = vmatprep.subr.bf16.mxu0 0
        %1165 = vmatpush1.bf16.msra.mxu0 0
        %1166 = vmatprep.subr.bf16.mxu0 0
        %1167 = vmatpush1.bf16.msra.mxu0 0
        %1168 = vmatprep.subr.bf16.mxu0 0
        %1169 = vmatpush1.bf16.msra.mxu0 0
        %1170 = vmatprep.subr.bf16.mxu0 0
        %1171 = vmatpush1.bf16.msra.mxu0 0
        %1172 = vmatprep.subr.bf16.mxu0 0
        %1173 = vmatpush1.bf16.msra.mxu0 0
        %1174 = vmatprep.mubr.bf16.mxu0 0
        %1175 = vmatmul.mubr.bf16.gmra.mrb[0].mxu0 %v1136
        %v1176 = vpop.f32.mrb[0].mxu0
        %v1177 = vadd.f32 0.0, %v1176
        %v1178 = vpop.f32.mrb[0].mxu0
        %v1179 = vpop.f32.mrb[0].mxu0
        %v1180 = vpop.f32.mrb[0].mxu0
        %1181 = vdwg.mxu0
        %1183 = vrot.lane.b32.xlu0 %v883, 96
        %v1184 = vpop.permute.xlu0 %1183
        %v1186 = vsel %vm895, %v1129, 0
        %v1189 = vsel %vm1138, %v1184, 0
        %1191 = vmatprep.subr.bf16.mxu0 0
        %1192 = vmatpush1.bf16.msra.mxu0 %v1189
        %1193 = vmatprep.subr.bf16.mxu0 0
        %1194 = vmatpush1.bf16.msra.mxu0 0
        %1195 = vmatprep.subr.bf16.mxu0 0
        %1196 = vmatpush1.bf16.msra.mxu0 0
        %1197 = vmatprep.subr.bf16.mxu0 0
        %1198 = vmatpush1.bf16.msra.mxu0 0
        %1199 = vmatprep.subr.bf16.mxu0 0
        %1200 = vmatpush1.bf16.msra.mxu0 0
        %1201 = vmatprep.subr.bf16.mxu0 0
        %1202 = vmatpush1.bf16.msra.mxu0 0
        %1203 = vmatprep.subr.bf16.mxu0 0
        %1204 = vmatpush1.bf16.msra.mxu0 0
        %1205 = vmatprep.subr.bf16.mxu0 0
        %1206 = vmatpush1.bf16.msra.mxu0 0
        %1207 = vmatprep.subr.bf16.mxu0 0
        %1208 = vmatpush1.bf16.msra.mxu0 0
        %1209 = vmatprep.subr.bf16.mxu0 0
        %1210 = vmatpush1.bf16.msra.mxu0 0
        %1211 = vmatprep.subr.bf16.mxu0 0
        %1212 = vmatpush1.bf16.msra.mxu0 0
        %1213 = vmatprep.subr.bf16.mxu0 0
        %1214 = vmatpush1.bf16.msra.mxu0 0
        %1215 = vmatprep.subr.bf16.mxu0 0
        %1216 = vmatpush1.bf16.msra.mxu0 0
        %1217 = vmatprep.subr.bf16.mxu0 0
        %1218 = vmatpush1.bf16.msra.mxu0 0
        %1219 = vmatprep.subr.bf16.mxu0 0
        %1220 = vmatpush1.bf16.msra.mxu0 0
        %1221 = vmatprep.subr.bf16.mxu0 0
        %1222 = vmatpush1.bf16.msra.mxu0 0
        %1223 = vmatprep.mubr.bf16.mxu0 0
        %1224 = vmatmul.mubr.bf16.gmra.mrb[0].mxu0 %v1186
        %v1225 = vpop.f32.mrb[0].mxu0
        %v1226 = vadd.f32 0.0, %v1225
        %v1227 = vpop.f32.mrb[0].mxu0
        %v1228 = vpop.f32.mrb[0].mxu0
        %v1229 = vpop.f32.mrb[0].mxu0
        %1230 = vdwg.mxu0
        %1232 = vrot.lane.b32.xlu0 %v884, 96
        %v1233 = vpop.permute.xlu0 %1232
        %v1235 = vsel %vm895, %v1130, 0
        %v1238 = vsel %vm1138, %v1233, 0
        %1240 = vmatprep.subr.bf16.mxu0 0
        %1241 = vmatpush1.bf16.msra.mxu0 %v1238
        %1242 = vmatprep.subr.bf16.mxu0 0
        %1243 = vmatpush1.bf16.msra.mxu0 0
        %1244 = vmatprep.subr.bf16.mxu0 0
        %1245 = vmatpush1.bf16.msra.mxu0 0
        %1246 = vmatprep.subr.bf16.mxu0 0
        %1247 = vmatpush1.bf16.msra.mxu0 0
        %1248 = vmatprep.subr.bf16.mxu0 0
        %1249 = vmatpush1.bf16.msra.mxu0 0
        %1250 = vmatprep.subr.bf16.mxu0 0
        %1251 = vmatpush1.bf16.msra.mxu0 0
        %1252 = vmatprep.subr.bf16.mxu0 0
        %1253 = vmatpush1.bf16.msra.mxu0 0
        %1254 = vmatprep.subr.bf16.mxu0 0
        %1255 = vmatpush1.bf16.msra.mxu0 0
        %1256 = vmatprep.subr.bf16.mxu0 0
        %1257 = vmatpush1.bf16.msra.mxu0 0
        %1258 = vmatprep.subr.bf16.mxu0 0
        %1259 = vmatpush1.bf16.msra.mxu0 0
        %1260 = vmatprep.subr.bf16.mxu0 0
        %1261 = vmatpush1.bf16.msra.mxu0 0
        %1262 = vmatprep.subr.bf16.mxu0 0
        %1263 = vmatpush1.bf16.msra.mxu0 0
        %1264 = vmatprep.subr.bf16.mxu0 0
        %1265 = vmatpush1.bf16.msra.mxu0 0
        %1266 = vmatprep.subr.bf16.mxu0 0
        %1267 = vmatpush1.bf16.msra.mxu0 0
        %1268 = vmatprep.subr.bf16.mxu0 0
        %1269 = vmatpush1.bf16.msra.mxu0 0
        %1270 = vmatprep.subr.bf16.mxu0 0
        %1271 = vmatpush1.bf16.msra.mxu0 0
        %1272 = vmatprep.mubr.bf16.mxu0 0
        %1273 = vmatmul.mubr.bf16.gmra.mrb[0].mxu0 %v1235
        %v1274 = vpop.f32.mrb[0].mxu0
        %v1275 = vadd.f32 0.0, %v1274
        %v1276 = vpop.f32.mrb[0].mxu0
        %v1277 = vpop.f32.mrb[0].mxu0
        %v1278 = vpop.f32.mrb[0].mxu0
        %1279 = vdwg.mxu0
        %1281 = vrot.lane.b32.xlu0 %v885, 96
        %v1282 = vpop.permute.xlu0 %1281
        %v1284 = vsel %vm895, %v1131, 0
        %v1287 = vsel %vm1138, %v1282, 0
        %1289 = vmatprep.subr.bf16.mxu0 0
        %1290 = vmatpush1.bf16.msra.mxu0 %v1287
        %1291 = vmatprep.subr.bf16.mxu0 0
        %1292 = vmatpush1.bf16.msra.mxu0 0
        %1293 = vmatprep.subr.bf16.mxu0 0
        %1294 = vmatpush1.bf16.msra.mxu0 0
        %1295 = vmatprep.subr.bf16.mxu0 0
        %1296 = vmatpush1.bf16.msra.mxu0 0
        %1297 = vmatprep.subr.bf16.mxu0 0
        %1298 = vmatpush1.bf16.msra.mxu0 0
        %1299 = vmatprep.subr.bf16.mxu0 0
        %1300 = vmatpush1.bf16.msra.mxu0 0
        %1301 = vmatprep.subr.bf16.mxu0 0
        %1302 = vmatpush1.bf16.msra.mxu0 0
        %1303 = vmatprep.subr.bf16.mxu0 0
        %1304 = vmatpush1.bf16.msra.mxu0 0
        %1305 = vmatprep.subr.bf16.mxu0 0
        %1306 = vmatpush1.bf16.msra.mxu0 0
        %1307 = vmatprep.subr.bf16.mxu0 0
        %1308 = vmatpush1.bf16.msra.mxu0 0
        %1309 = vmatprep.subr.bf16.mxu0 0
        %1310 = vmatpush1.bf16.msra.mxu0 0
        %1311 = vmatprep.subr.bf16.mxu0 0
        %1312 = vmatpush1.bf16.msra.mxu0 0
        %1313 = vmatprep.subr.bf16.mxu0 0
        %1314 = vmatpush1.bf16.msra.mxu0 0
        %1315 = vmatprep.subr.bf16.mxu0 0
        %1316 = vmatpush1.bf16.msra.mxu0 0
        %1317 = vmatprep.subr.bf16.mxu0 0
        %1318 = vmatpush1.bf16.msra.mxu0 0
        %1319 = vmatprep.subr.bf16.mxu0 0
        %1320 = vmatpush1.bf16.msra.mxu0 0
        %1321 = vmatprep.mubr.bf16.mxu0 0
        %1322 = vmatmul.mubr.bf16.gmra.mrb[0].mxu0 %v1284
        %v1323 = vpop.f32.mrb[0].mxu0
        %v1324 = vadd.f32 0.0, %v1323
        %v1325 = vpop.f32.mrb[0].mxu0
        %v1326 = vpop.f32.mrb[0].mxu0
        %v1327 = vpop.f32.mrb[0].mxu0
        %1328 = vdwg.mxu0
        %1330 = vrot.lane.b32.xlu0 %v1226, 8
        %v1331 = vpop.permute.xlu0 %1330
        %1334 = vrot.lane.b32.xlu0 %v1275, 16
        %v1335 = vpop.permute.xlu0 %1334
        %1338 = vrot.lane.b32.xlu0 %v1324, 24
        %v1339 = vpop.permute.xlu0 %1338
        %v1341 = vsel %vm895, %v1177, %v1331
        %vm1342 = vcmask 130048
        %v1343 = vsel %vm1342, %v1341, %v1335
        %vm1344 = vcmask 195584
        %v1345 = vsel %vm1344, %v1343, %v1339
        %v1346 = vpack.c.bf16 %v1345, %v1345
        %v1347 = vld [vmem:[#allocation8] sm:$0xf]
        %v1348 = vld [vmem:[#allocation8 + $0x4] sm:$0xf]
        %v1349 = vld [vmem:[#allocation8 + $0x8] sm:$0xf]
        %v1350 = vld [vmem:[#allocation8 + $0xc] sm:$0xf]
        %v1351 = vld [vmem:[#allocation10] sm:$0x1]
        %v1353 = vlaneseq
        %v1354 = vshrl.u32 %v1353, 7
        %v1355 = vsub.s32 0, %v1354
        %v1356 = vrot.slane %v1351, %v1355
        %v1362 = vunpack.c.l.b16 %v1347
        %v1363 = vunpack.c.l.b16 %v1348
        %v1364 = vunpack.c.l.b16 %v1349
        %v1365 = vunpack.c.l.b16 %v1350
        %v1366 = vpack.c.b16 %v1363, %v1362
        %v1367 = vpack.c.b16 %v1365, %v1364
        %v1371 = vsel %vm748, %v1346, 0
        %1373 = vmatprep.subr.bf16.mxu0 0
        %1374 = vmatpush1.bf16.msra.mxu0 %v1366
        %1375 = vmatprep.subr.bf16.mxu0 0
        %1376 = vmatpush1.bf16.msra.mxu0 %v1367
        %1377 = vmatprep.subr.bf16.mxu0 0
        %1378 = vmatpush1.bf16.msra.mxu0 0
        %1379 = vmatprep.subr.bf16.mxu0 0
        %1380 = vmatpush1.bf16.msra.mxu0 0
        %1381 = vmatprep.subr.bf16.mxu0 0
        %1382 = vmatpush1.bf16.msra.mxu0 0
        %1383 = vmatprep.subr.bf16.mxu0 0
        %1384 = vmatpush1.bf16.msra.mxu0 0
        %1385 = vmatprep.subr.bf16.mxu0 0
        %1386 = vmatpush1.bf16.msra.mxu0 0
        %1387 = vmatprep.subr.bf16.mxu0 0
        %1388 = vmatpush1.bf16.msra.mxu0 0
        %1389 = vmatprep.subr.bf16.mxu0 0
        %1390 = vmatpush1.bf16.msra.mxu0 0
        %1391 = vmatprep.subr.bf16.mxu0 0
        %1392 = vmatpush1.bf16.msra.mxu0 0
        %1393 = vmatprep.subr.bf16.mxu0 0
        %1394 = vmatpush1.bf16.msra.mxu0 0
        %1395 = vmatprep.subr.bf16.mxu0 0
        %1396 = vmatpush1.bf16.msra.mxu0 0
        %1397 = vmatprep.subr.bf16.mxu0 0
        %1398 = vmatpush1.bf16.msra.mxu0 0
        %1399 = vmatprep.subr.bf16.mxu0 0
        %1400 = vmatpush1.bf16.msra.mxu0 0
        %1401 = vmatprep.subr.bf16.mxu0 0
        %1402 = vmatpush1.bf16.msra.mxu0 0
        %1403 = vmatprep.subr.bf16.mxu0 0
        %1404 = vmatpush1.bf16.msra.mxu0 0
        %1405 = vmatprep.mubr.bf16.mxu0 0
        %1406 = vmatmul.mubr.bf16.gmra.mrb[0].mxu0 %v1371
        %v1407 = vpop.f32.mrb[0].mxu0
        %v1408 = vadd.f32 %v1356, %v1407
        %v1409 = vpop.f32.mrb[0].mxu0
        %v1410 = vpop.f32.mrb[0].mxu0
        %v1411 = vpop.f32.mrb[0].mxu0
        %1412 = vdwg.mxu0
        %v1413 = vadd.f32 %v721, %v1408
        %v1414 = vld [vmem:[#allocation11] sm:$0x1]
        %v1415 = vld [vmem:[%s10] sm:$0x1]
        %v1416 = vsel %vm748, %v1413, 0.0
        %1417 = vadd.xlane.f32.xlu0 %v1416
        %v1418 = vpop.xlane.xlu0 %1417
        %v1419 = vrcp.pop 32.0
        %v1420 = vmul.f32 %v1418, %v1419
        %v1421 = vsub.f32 %v1413, %v1420
        %v1422 = vmul.f32 %v1421, %v1421
        %v1423 = vsel %vm748, %v1422, 0.0
        %1424 = vadd.xlane.f32.xlu0 %v1423
        %v1425 = vpop.xlane.xlu0 %1424
        %v1426 = vmul.f32 %v1425, %v1419
        %v1427 = vadd.f32 %v1426, 1e-05
        %v1428 = vrsqrt.pop %v1427
        %v1429 = vmul.f32 %v1421, %v1428
        %v1431 = vlaneseq
        %v1432 = vshrl.u32 %v1431, 7
        %v1433 = vsub.s32 0, %v1432
        %v1434 = vrot.slane %v1414, %v1433
        %v1436 = vmul.f32 %v1429, %v1434
        %v1438 = vlaneseq
        %v1439 = vshrl.u32 %v1438, 7
        %v1440 = vsub.s32 0, %v1439
        %v1441 = vrot.slane %v1415, %v1440
        %v1443 = vadd.f32 %v1436, %v1441
        %v1444 = vpack.c.bf16 %v1443, %v1443
        %v1445 = vld [vmem:[%s11] sm:$0xf]
        %v1446 = vld [vmem:[%s11 + $0x4] sm:$0xf]
        %v1447 = vld [vmem:[%s11 + $0x8] sm:$0xf]
        %v1448 = vld [vmem:[%s11 + $0xc] sm:$0xf]
        %v1449 = vld [vmem:[%s12] sm:$0x1]
        %v1451 = vlaneseq
        %v1452 = vshrl.u32 %v1451, 7
        %v1453 = vsub.s32 0, %v1452
        %v1454 = vrot.slane %v1449, %v1453
        %v1460 = vunpack.c.l.b16 %v1445
        %v1461 = vunpack.c.l.b16 %v1446
        %v1462 = vunpack.c.l.b16 %v1447
        %v1463 = vunpack.c.l.b16 %v1448
        %v1464 = vpack.c.b16 %v1461, %v1460
        %v1465 = vpack.c.b16 %v1463, %v1462
        %v1469 = vsel %vm748, %v1444, 0
        %1471 = vmatprep.subr.bf16.mxu0 0
        %1472 = vmatpush1.bf16.msra.mxu0 %v1464
        %1473 = vmatprep.subr.bf16.mxu0 0
        %1474 = vmatpush1.bf16.msra.mxu0 %v1465
        %1475 = vmatprep.subr.bf16.mxu0 0
        %1476 = vmatpush1.bf16.msra.mxu0 0
        %1477 = vmatprep.subr.bf16.mxu0 0
        %1478 = vmatpush1.bf16.msra.mxu0 0
        %1479 = vmatprep.subr.bf16.mxu0 0
        %1480 = vmatpush1.bf16.msra.mxu0 0
        %1481 = vmatprep.subr.bf16.mxu0 0
        %1482 = vmatpush1.bf16.msra.mxu0 0
        %1483 = vmatprep.subr.bf16.mxu0 0
        %1484 = vmatpush1.bf16.msra.mxu0 0
        %1485 = vmatprep.subr.bf16.mxu0 0
        %1486 = vmatpush1.bf16.msra.mxu0 0
        %1487 = vmatprep.subr.bf16.mxu0 0
        %1488 = vmatpush1.bf16.msra.mxu0 0
        %1489 = vmatprep.subr.bf16.mxu0 0
        %1490 = vmatpush1.bf16.msra.mxu0 0
        %1491 = vmatprep.subr.bf16.mxu0 0
        %1492 = vmatpush1.bf16.msra.mxu0 0
        %1493 = vmatprep.subr.bf16.mxu0 0
        %1494 = vmatpush1.bf16.msra.mxu0 0
        %1495 = vmatprep.subr.bf16.mxu0 0
        %1496 = vmatpush1.bf16.msra.mxu0 0
        %1497 = vmatprep.subr.bf16.mxu0 0
        %1498 = vmatpush1.bf16.msra.mxu0 0
        %1499 = vmatprep.subr.bf16.mxu0 0
        %1500 = vmatpush1.bf16.msra.mxu0 0
        %1501 = vmatprep.subr.bf16.mxu0 0
        %1502 = vmatpush1.bf16.msra.mxu0 0
        %1503 = vmatprep.mubr.bf16.mxu0 0
        %1504 = vmatmul.mubr.bf16.gmra.mrb[0].mxu0 %v1469
        %v1505 = vpop.f32.mrb[0].mxu0
        %v1506 = vadd.f32 %v1454, %v1505
        %v1507 = vpop.f32.mrb[0].mxu0
        %v1508 = vpop.f32.mrb[0].mxu0
        %v1509 = vpop.f32.mrb[0].mxu0
        %1510 = vdwg.mxu0
        %v1511 = vmax.f32 %v1506, 0.0
        %v1512 = vpack.c.bf16 %v1511, %v1511
        %v1513 = vld [vmem:[%s13] sm:$0xf]
        %v1514 = vld [vmem:[%s13 + $0x4] sm:$0xf]
        %v1515 = vld [vmem:[%s13 + $0x8] sm:$0xf]
        %v1516 = vld [vmem:[%s13 + $0xc] sm:$0xf]
        %v1517 = vld [vmem:[%s13 + $0x10] sm:$0xf]
        %v1518 = vld [vmem:[%s13 + $0x14] sm:$0xf]
        %v1519 = vld [vmem:[%s13 + $0x18] sm:$0xf]
        %v1520 = vld [vmem:[%s13 + $0x1c] sm:$0xf]
        %v1521 = vld [vmem:[%s14] sm:$0x1]
        %v1523 = vlaneseq
        %v1524 = vshrl.u32 %v1523, 7
        %v1525 = vsub.s32 0, %v1524
        %v1526 = vrot.slane %v1521, %v1525
        %v1536 = vunpack.c.l.b16 %v1513
        %v1537 = vunpack.c.l.b16 %v1514
        %v1538 = vunpack.c.l.b16 %v1515
        %v1539 = vunpack.c.l.b16 %v1516
        %v1540 = vunpack.c.l.b16 %v1517
        %v1541 = vunpack.c.l.b16 %v1518
        %v1542 = vunpack.c.l.b16 %v1519
        %v1543 = vunpack.c.l.b16 %v1520
        %v1544 = vpack.c.b16 %v1537, %v1536
        %v1545 = vpack.c.b16 %v1539, %v1538
        %v1546 = vpack.c.b16 %v1541, %v1540
        %v1547 = vpack.c.b16 %v1543, %v1542
        %vm1552 = vcmask 523264
        %v1554 = vsel %vm1552, %v1512, 0
        %1556 = vmatprep.subr.bf16.mxu0 0
        %1557 = vmatpush1.bf16.msra.mxu0 %v1544
        %1558 = vmatprep.subr.bf16.mxu0 0
        %1559 = vmatpush1.bf16.msra.mxu0 %v1545
        %1560 = vmatprep.subr.bf16.mxu0 0
        %1561 = vmatpush1.bf16.msra.mxu0 %v1546
        %1562 = vmatprep.subr.bf16.mxu0 0
        %1563 = vmatpush1.bf16.msra.mxu0 %v1547
        %1564 = vmatprep.subr.bf16.mxu0 0
        %1565 = vmatpush1.bf16.msra.mxu0 0
        %1566 = vmatprep.subr.bf16.mxu0 0
        %1567 = vmatpush1.bf16.msra.mxu0 0
        %1568 = vmatprep.subr.bf16.mxu0 0
        %1569 = vmatpush1.bf16.msra.mxu0 0
        %1570 = vmatprep.subr.bf16.mxu0 0
        %1571 = vmatpush1.bf16.msra.mxu0 0
        %1572 = vmatprep.subr.bf16.mxu0 0
        %1573 = vmatpush1.bf16.msra.mxu0 0
        %1574 = vmatprep.subr.bf16.mxu0 0
        %1575 = vmatpush1.bf16.msra.mxu0 0
        %1576 = vmatprep.subr.bf16.mxu0 0
        %1577 = vmatpush1.bf16.msra.mxu0 0
        %1578 = vmatprep.subr.bf16.mxu0 0
        %1579 = vmatpush1.bf16.msra.mxu0 0
        %1580 = vmatprep.subr.bf16.mxu0 0
        %1581 = vmatpush1.bf16.msra.mxu0 0
        %1582 = vmatprep.subr.bf16.mxu0 0
        %1583 = vmatpush1.bf16.msra.mxu0 0
        %1584 = vmatprep.subr.bf16.mxu0 0
        %1585 = vmatpush1.bf16.msra.mxu0 0
        %1586 = vmatprep.subr.bf16.mxu0 0
        %1587 = vmatpush1.bf16.msra.mxu0 0
        %1588 = vmatprep.mubr.bf16.mxu0 0
        %1589 = vmatmul.mubr.bf16.gmra.mrb[0].mxu0 %v1554
        %v1590 = vpop.f32.mrb[0].mxu0
        %v1591 = vadd.f32 %v1526, %v1590
        %v1592 = vpop.f32.mrb[0].mxu0
        %v1593 = vpop.f32.mrb[0].mxu0
        %v1594 = vpop.f32.mrb[0].mxu0
        %1595 = vdwg.mxu0
        %v1596 = vadd.f32 %v1443, %v1591
        %v1597 = vld [vmem:[%s15] sm:$0x1]
        %v1598 = vld [vmem:[%s16] sm:$0x1]
        %v1599 = vsel %vm748, %v1596, 0.0
        %1600 = vadd.xlane.f32.xlu0 %v1599
        %v1601 = vpop.xlane.xlu0 %1600
        %v1602 = vmul.f32 %v1601, %v1419
        %v1603 = vsub.f32 %v1596, %v1602
        %v1604 = vmul.f32 %v1603, %v1603
        %v1605 = vsel %vm748, %v1604, 0.0
        %1606 = vadd.xlane.f32.xlu0 %v1605
        %v1607 = vpop.xlane.xlu0 %1606
        %v1608 = vmul.f32 %v1607, %v1419
        %v1609 = vadd.f32 %v1608, 1e-05
        %v1610 = vrsqrt.pop %v1609
        %v1611 = vmul.f32 %v1603, %v1610
        %v1613 = vlaneseq
        %v1614 = vshrl.u32 %v1613, 7
        %v1615 = vsub.s32 0, %v1614
        %v1616 = vrot.slane %v1597, %v1615
        %v1618 = vmul.f32 %v1611, %v1616
        %v1620 = vlaneseq
        %v1621 = vshrl.u32 %v1620, 7
        %v1622 = vsub.s32 0, %v1621
        %v1623 = vrot.slane %v1598, %v1622
        %v1625 = vadd.f32 %v1618, %v1623
        %1626 = vst.msk [vmem:[%s698] sm:$0xff] %vm748, %v1625
        %s1627 = sand.u32 %s436, 1
        %s1628 = scalar_lea.sflag [#allocation4], %s1627
        %s1629 = sand.u32 %s436, 1
        %s1630 = smul.addr %s1629, 8
        %s1631 = scalar_lea.vmem [#allocation13], %s1630
        %s1632 = sand.u32 %s464, 1
        %s1633 = scalar_lea.sflag [#allocation15], %s1632
        %s1634 = sand.u32 %s464, 1
        %s1635 = smul.addr %s1634, 32
        %s1636 = scalar_lea.vmem [#allocation14], %s1635
        // Predicated region
        $region113: #{tpu_custom_call.1} parent=87 // pred_check
          %p1637 = pneg %p446
        $region114: #{tpu_custom_call.1} parent=87 // pred_check_branch
          %1639 = sbr.rel (%p1637) target = $region116
        $region115: #{tpu_custom_call.1} parent=87 // pred_region
          %s1641 = ssub.s32 128, 128
          %1642 = vsyncadd %s1628, %s1641
          %s1643 = sadd.s32 %s45, %s44
          %s1644 = smul.addr %s1643, 128
          %s1645 = scalar_lea.hbm %s17, %s1644
          %s1647 = sshll.u32 %s1631, 4
          %s1648 = int_to_ptr.vmem [resolvable:$true] %s1647
          %1650 = dma.vmem_to_hbm [thread:$0]  %s1648, 128, %s1645, %s1628
        $region116: #{tpu_custom_call.1} parent=87 // pred_fallthru
          _
        // Predicated region
        $region117: #{tpu_custom_call.1} parent=87 // pred_check
          %p1651 = pneg %p474
        $region118: #{tpu_custom_call.1} parent=87 // pred_check_branch
          %1653 = sbr.rel (%p1651) target = $region120
        $region119: #{tpu_custom_call.1} parent=87 // pred_region
          %s1655 = ssub.s32 512, 512
          %1656 = vsyncadd %s1633, %s1655
          %s1657 = smul.addr %s44, 4
          %s1658 = sadd.s32 %s45, %s1657
          %s1659 = smul.addr %s1658, 128
          %s1660 = scalar_lea.hbm %s18, %s1659
          %s1661 = sshll.u32 %s1636, 4
          %s1662 = int_to_ptr.vmem [resolvable:$true] %s1661
          %1667 = dma.vmem_to_hbm [thread:$0]  %s1662, 512, %s1660, %s1633, 128, 128, 8
        $region120: #{tpu_custom_call.1} parent=87 // pred_fallthru
          _
      $region88: #{tpu_custom_call.1} parent=5 // pred_fallthru
        _
      %p1668 = scmp.le.s32.totalorder 2, %s35
      // Predicated region
      $region121: #{tpu_custom_call.1} parent=5 // pred_check
        %p1669 = pneg %p1668
      $region122: #{tpu_custom_call.1} parent=5 // pred_check_branch
        %1671 = sbr.rel (%p1669) target = $region124
      $region123: #{tpu_custom_call.1} parent=5 // pred_region
        %s1672 = ssub.s32 %s35, 2
        // Predicated region
        $region125: #{tpu_custom_call.1} parent=123 // pred_check
          %p1673 = pneg %p452
        $region126: #{tpu_custom_call.1} parent=123 // pred_check_branch
          %1675 = sbr.rel (%p1673) target = $region128
        $region127: #{tpu_custom_call.1} parent=123 // pred_region
          %s1676 = sand.u32 %s437, 1
          %s1677 = scalar_lea.sflag [#allocation4], %s1676
          %s1678 = sand.u32 %s437, 1
          %s1679 = smul.addr %s1678, 8
          %s1680 = scalar_lea.vmem [#allocation13], %s1679
          %1681 = dma.done %s1677, 128
        $region128: #{tpu_custom_call.1} parent=123 // pred_fallthru
          _
        // Predicated region
        $region129: #{tpu_custom_call.1} parent=123 // pred_check
          %p1682 = pneg %p480
        $region130: #{tpu_custom_call.1} parent=123 // pred_check_branch
          %1684 = sbr.rel (%p1682) target = $region132
        $region131: #{tpu_custom_call.1} parent=123 // pred_region
          %s1685 = sand.u32 %s465, 1
          %s1686 = scalar_lea.sflag [#allocation15], %s1685
          %s1687 = sand.u32 %s465, 1
          %s1688 = smul.addr %s1687, 32
          %s1689 = scalar_lea.vmem [#allocation14], %s1688
          %1690 = dma.done %s1686, 512
        $region132: #{tpu_custom_call.1} parent=123 // pred_fallthru
          _
      $region124: #{tpu_custom_call.1} parent=5 // pred_fallthru
        _
    $region6: #{tpu_custom_call.1} parent=1 // loop_footer
      %s39 = sadd.s32 1, %s35
    $region7: #{tpu_custom_call.1} parent=1 // loop_footer_branch
      %34 = sbr.rel target = $region3
    $region8: #{tpu_custom_call.1} parent=1 // loop_exit
      _
    %1691 = vsyncpa [#allocation3], 1
    %s1692 = scalar_lea.sflag [#allocation3], 1
    %1693 = vsyncpa %s1692, 1
    %1694 = vsyncpa [#allocation6], 1
    %1695 = vsyncpa [#allocation9], 1
    %1696 = vsyncpa [#allocation12], 1
    %1697 = vsyncpa [#allocation4], 1
    %s1698 = scalar_lea.sflag [#allocation4], 1
    %1699 = vsyncpa %s1698, 1
    %1700 = vsyncpa [#allocation15], 1
    %s1701 = scalar_lea.sflag [#allocation15], 1
    %1702 = vsyncpa %s1701, 1

</llo_original>
